<compile_context>
chip_gen: v5e
topology: v5e:2x2
jax: 0.10.0
libtpu: 0.0.40
codegen_flags: <defaults>
</compile_context>

<pallas_src>
import numpy as np

import jax
import jax.numpy as jnp
from jax.experimental import pallas as pl
from jax.experimental.pallas import tpu as pltpu

# Architecture constants (H=20, W=12 is forced by Linear(240,128): 16 * 5 * 3 = 240).
KSIZE = 5
H1, W1, C1 = 20, 12, 8      # conv1 output spatial / channels
H2, W2, C2 = 10, 6, 16      # after pool1 / conv2 channels
H3, W3 = 5, 3               # after pool2


# ------------------------------------------------------------------- kernel ---

def convnet_kernel(
    x_ref,                                                             # (N*H1, W1)
    s1_ref, b1_ref, grp1_ref, grp1t_ref, gm1_ref, bt1_ref, ph1_ref, pw1_ref,
    s2_ref, b2_ref, grp2_ref, grp2t_ref, gm2_ref, bt2_ref, ph2_ref, pw2_ref,
    rn_ref, f1_ref, fb1_ref, fw2_ref, fb2_ref, fw3_ref, fb3_ref,
    o_ref,                                                             # (N, 1)
):
    def dot(a, b):
        return jnp.dot(a, b, preferred_element_type=jnp.float32)

    def bn_relu(y, grp_ref, grp_t_ref, gamma_ref, beta_ref, count):
        # BatchNorm2d, training mode: biased batch stats over (N, H, W) per channel.
        ch_sum = jnp.sum(dot(y, grp_ref[...]), axis=0, keepdims=True)       # (1, C)
        ch_sq = jnp.sum(dot(y * y, grp_ref[...]), axis=0, keepdims=True)    # (1, C)
        mean = ch_sum / count
        var = ch_sq / count - mean * mean
        scale = gamma_ref[...] * jax.lax.rsqrt(var + 1e-5)                  # (1, C)
        shift = beta_ref[...] - mean * scale
        # expand per-channel scale/shift back to the (w, c) lane layout
        scale_l = dot(scale, grp_t_ref[...])                                # (1, W*C)
        shift_l = dot(shift, grp_t_ref[...])
        return jnp.maximum(y * scale_l + shift_l, 0.0)

    def pool2x2(y, ph_ref, pw_ref):
        # rows: max(even-h, odd-h) via 0/1 selector matmuls; lanes: same for even/odd w.
        h = jnp.maximum(dot(ph_ref[0], y), dot(ph_ref[1], y))
        return jnp.maximum(dot(h, pw_ref[0]), dot(h, pw_ref[1]))

    x = x_ref[...]                        # rows = (n, h), lanes = w
    n_h1 = x.shape[0]
    n_h2 = ph1_ref.shape[1]

    # ---- layer1: Conv2d(1->8, k5, s1, p2)  (bias cancelled by BN) ----
    acc1 = dot(dot(s1_ref[0], x), b1_ref[0])
    for kh in range(1, KSIZE):
        acc1 = acc1 + dot(dot(s1_ref[kh], x), b1_ref[kh])        # (N*H1, W1*C1)
    z1 = bn_relu(acc1, grp1_ref, grp1t_ref, gm1_ref, bt1_ref, float(n_h1 * W1))
    p1 = pool2x2(z1, ph1_ref, pw1_ref)                           # (N*H2, W2*C1)

    # ---- layer2: Conv2d(8->16, k5, s1, p2) ----
    acc2 = dot(dot(s2_ref[0], p1), b2_ref[0])
    for kh in range(1, KSIZE):
        acc2 = acc2 + dot(dot(s2_ref[kh], p1), b2_ref[kh])       # (N*H2, W2*C2)
    z2 = bn_relu(acc2, grp2_ref, grp2t_ref, gm2_ref, bt2_ref, float(n_h2 * W2))
    p2 = pool2x2(z2, ph2_ref, pw2_ref)                           # (N*H3, W3*C2)

    # ---- flatten (PyTorch NCHW order folded into f1_ref) + Linear/ReLU stack ----
    h = fb1_ref[...] + dot(dot(rn_ref[0], p2), f1_ref[0])
    for h3 in range(1, H3):
        h = h + dot(dot(rn_ref[h3], p2), f1_ref[h3])             # (N, 128)
    h = jnp.maximum(h, 0.0)
    h = jnp.maximum(dot(h, fw2_ref[...]) + fb2_ref[...], 0.0)    # (N, 64)
    o_ref[...] = dot(h, fw3_ref[...]) + fb3_ref[...]             # (N, 1)


# ------------------------------------------------- host-side constant builders ---

def _selector_constants(n):
    """0/1 selection / grouping matrices (weight independent, trace-time constants)."""
    s1 = np.zeros((KSIZE, n * H1, n * H1), np.float32)   # row shift (h+kh-2) for conv1
    s2 = np.zeros((KSIZE, n * H2, n * H2), np.float32)   # row shift for conv2
    for kh in range(KSIZE):
        for b in range(n):
            for h in range(H1):
                hs = h + kh - 2
                if 0 <= hs < H1:
                    s1[kh, b * H1 + h, b * H1 + hs] = 1.0
            for h in range(H2):
                hs = h + kh - 2
                if 0 <= hs < H2:
                    s2[kh, b * H2 + h, b * H2 + hs] = 1.0

    d1 = np.zeros((KSIZE, W1, W1), np.float32)           # band placement: wp == w + kw - 2
    d2 = np.zeros((KSIZE, W2, W2), np.float32)
    for kw in range(KSIZE):
        for w in range(W1):
            wp = w + kw - 2
            if 0 <= wp < W1:
                d1[kw, wp, w] = 1.0
        for w in range(W2):
            wp = w + kw - 2
            if 0 <= wp < W2:
                d2[kw, wp, w] = 1.0

    grp1 = np.zeros((W1 * C1, C1), np.float32)           # lane (w,c) -> channel c
    for w in range(W1):
        for ch in range(C1):
            grp1[w * C1 + ch, ch] = 1.0
    grp2 = np.zeros((W2 * C2, C2), np.float32)
    for w in range(W2):
        for ch in range(C2):
            grp2[w * C2 + ch, ch] = 1.0

    ph1 = np.zeros((2, n * H2, n * H1), np.float32)      # pool1 row (even/odd h) selectors
    pw1 = np.zeros((2, W1 * C1, W2 * C1), np.float32)    # pool1 lane (even/odd w) selectors
    ph2 = np.zeros((2, n * H3, n * H2), np.float32)
    pw2 = np.zeros((2, W2 * C2, W3 * C2), np.float32)
    for b in range(n):
        for h in range(H2):
            ph1[0, b * H2 + h, b * H1 + 2 * h] = 1.0
            ph1[1, b * H2 + h, b * H1 + 2 * h + 1] = 1.0
        for h in range(H3):
            ph2[0, b * H3 + h, b * H2 + 2 * h] = 1.0
            ph2[1, b * H3 + h, b * H2 + 2 * h + 1] = 1.0
    for w in range(W2):
        for ch in range(C1):
            pw1[0, (2 * w) * C1 + ch, w * C1 + ch] = 1.0
            pw1[1, (2 * w + 1) * C1 + ch, w * C1 + ch] = 1.0
    for w in range(W3):
        for ch in range(C2):
            pw2[0, (2 * w) * C2 + ch, w * C2 + ch] = 1.0
            pw2[1, (2 * w + 1) * C2 + ch, w * C2 + ch] = 1.0

    rn = np.zeros((H3, n, n * H3), np.float32)           # pick rows (n, h3) for the flatten
    for b in range(n):
        for h in range(H3):
            rn[h, b, b * H3 + h] = 1.0

    return dict(s1=s1, s2=s2, d1=d1, d2=d2, grp1=grp1, grp2=grp2,
                ph1=ph1, pw1=pw1, ph2=ph2, pw2=pw2, rn=rn)


def _kernel_operands(x_nchw, params):
    n = x_nchw.shape[0]
    c = _selector_constants(n)

    # (N,1,20,12) NCHW -> 2-D slab (N*H1, W1); Cin = 1.
    x_slab = x_nchw.reshape(n * H1, W1).astype(jnp.float32)

    # Conv weights as W-banded matrices: B[kh][wp, w*C + cout] = W[cout, cin, kh, wp - w + 2].
    b1_band = jnp.einsum("ckq,qpw->kpwc", params["w1"][:, 0], c["d1"]).reshape(KSIZE, W1, W1 * C1)
    b2_band = jnp.einsum("oikq,qpw->kpiwo", params["w2"], c["d2"]).reshape(KSIZE, W2 * C1, W2 * C2)

    # fc1 weight permuted so the in-kernel (n,h3) x (w3,c) layout reproduces PyTorch's
    # NCHW reshape(out.size(0), -1) flatten exactly.
    f1_blocks = jnp.transpose(params["fc1_w"].reshape(128, C2, H3, W3),
                              (2, 3, 1, 0)).reshape(H3, W3 * C2, 128)

    return [
        x_slab,
        c["s1"], b1_band, c["grp1"], c["grp1"].T,
        params["bn1_gamma"].reshape(1, C1), params["bn1_beta"].reshape(1, C1),
        c["ph1"], c["pw1"],
        c["s2"], b2_band, c["grp2"], c["grp2"].T,
        params["bn2_gamma"].reshape(1, C2), params["bn2_beta"].reshape(1, C2),
        c["ph2"], c["pw2"],
        c["rn"], f1_blocks, params["fc1_b"].reshape(1, 128),
        params["fc2_w"].T, params["fc2_b"].reshape(1, 64),
        params["fc3_w"].T, params["fc3_b"].reshape(1, 1),
    ]


def convnet_forward(x_nchw, params):
    n = x_nchw.shape[0]
    ops = _kernel_operands(x_nchw, params)
    vmem = pl.BlockSpec(memory_space=pltpu.MemorySpace.VMEM)
    return pl.pallas_call(
        convnet_kernel,
        out_shape=jax.ShapeDtypeStruct((n, 1), jnp.float32),
        in_specs=[vmem] * len(ops),
        out_specs=vmem,
    )(*ops)


# ----------------------------------------------------------- reference & setup ---

def convnet_reference(x_nchw, params):
    """Plain-JAX mirror of the PyTorch module (training-mode BN, biased variance)."""
    def bn_relu(y, gamma, beta):
        mean = jnp.mean(y, axis=(0, 2, 3), keepdims=True)
        var = jnp.mean(jnp.square(y - mean), axis=(0, 2, 3), keepdims=True)
        yh = (y - mean) * jax.lax.rsqrt(var + 1e-5)
        return jnp.maximum(yh * gamma.reshape(1, -1, 1, 1) + beta.reshape(1, -1, 1, 1), 0.0)

    def pool(y):
        return jax.lax.reduce_window(y, -jnp.inf, jax.lax.max,
                                     (1, 1, 2, 2), (1, 1, 2, 2), "VALID")

    def conv(y, w):
        return jax.lax.conv_general_dilated(y, w, (1, 1), ((2, 2), (2, 2)),
                                            dimension_numbers=("NCHW", "OIHW", "NCHW"))

    y = pool(bn_relu(conv(x_nchw, params["w1"]), params["bn1_gamma"], params["bn1_beta"]))
    y = pool(bn_relu(conv(y, params["w2"]), params["bn2_gamma"], params["bn2_beta"]))
    flat = y.reshape(y.shape[0], -1)
    h = jnp.maximum(flat @ params["fc1_w"].T + params["fc1_b"], 0.0)
    h = jnp.maximum(h @ params["fc2_w"].T + params["fc2_b"], 0.0)
    return h @ params["fc3_w"].T + params["fc3_b"]


def init_params(key):
    ks = jax.random.split(key, 12)

    def nrm(k, shape, scale):
        return (scale * jax.random.normal(k, shape)).astype(jnp.float32)

    # PyTorch-native layouts. Conv biases are omitted on purpose: a per-channel bias right
    # before training-mode BatchNorm is cancelled exactly by the batch-mean subtraction.
    return dict(
        w1=nrm(ks[0], (C1, 1, KSIZE, KSIZE), 0.2),
        w2=nrm(ks[1], (C2, C1, KSIZE, KSIZE), 0.07),
        bn1_gamma=(1.0 + nrm(ks[2], (C1,), 0.1)), bn1_beta=nrm(ks[3], (C1,), 0.1),
        bn2_gamma=(1.0 + nrm(ks[4], (C2,), 0.1)), bn2_beta=nrm(ks[5], (C2,), 0.1),
        fc1_w=nrm(ks[6], (128, C2 * H3 * W3), 0.06), fc1_b=nrm(ks[7], (128,), 0.05),
        fc2_w=nrm(ks[8], (64, 128), 0.08), fc2_b=nrm(ks[9], (64,), 0.05),
        fc3_w=nrm(ks[10], (1, 64), 0.1), fc3_b=nrm(ks[11], (1,), 0.05),
    )


if __name__ == "__main__":
    key = jax.random.PRNGKey(0)
    kx, kp = jax.random.split(key)
    # H=20, W=12 so that after two 2x2 pools: 16 * 5 * 3 = 240 (matches Linear(240, 128)).
    x = jax.random.normal(kx, (2, 1, H1, W1), dtype=jnp.float32)   # NCHW like PyTorch
    params = init_params(kp)

    out = jax.block_until_ready(jax.jit(convnet_forward)(x, params))
    assert out.shape == (2, 1) and out.dtype == jnp.float32

    ref = jax.block_until_ready(convnet_reference(x, params))
    np.testing.assert_allclose(np.asarray(out), np.asarray(ref), rtol=5e-2, atol=5e-2)
    print("KERNEL_OK")
</pallas_src>

<mosaic_0001>
module attributes {stable_mosaic.version = 11 : i64} {
  func.func @convnet_kernel(%arg0: memref<40x12xf32, #tpu.memory_space<vmem>>, %arg1: memref<5x40x40xf32, #tpu.memory_space<vmem>>, %arg2: memref<5x12x96xf32, #tpu.memory_space<vmem>>, %arg3: memref<96x8xf32, #tpu.memory_space<vmem>>, %arg4: memref<8x96xf32, #tpu.memory_space<vmem>>, %arg5: memref<1x8xf32, #tpu.memory_space<vmem>>, %arg6: memref<1x8xf32, #tpu.memory_space<vmem>>, %arg7: memref<2x20x40xf32, #tpu.memory_space<vmem>>, %arg8: memref<2x96x48xf32, #tpu.memory_space<vmem>>, %arg9: memref<5x20x20xf32, #tpu.memory_space<vmem>>, %arg10: memref<5x48x96xf32, #tpu.memory_space<vmem>>, %arg11: memref<96x16xf32, #tpu.memory_space<vmem>>, %arg12: memref<16x96xf32, #tpu.memory_space<vmem>>, %arg13: memref<1x16xf32, #tpu.memory_space<vmem>>, %arg14: memref<1x16xf32, #tpu.memory_space<vmem>>, %arg15: memref<2x10x20xf32, #tpu.memory_space<vmem>>, %arg16: memref<2x96x48xf32, #tpu.memory_space<vmem>>, %arg17: memref<5x2x10xf32, #tpu.memory_space<vmem>>, %arg18: memref<5x48x128xf32, #tpu.memory_space<vmem>>, %arg19: memref<1x128xf32, #tpu.memory_space<vmem>>, %arg20: memref<128x64xf32, #tpu.memory_space<vmem>>, %arg21: memref<1x64xf32, #tpu.memory_space<vmem>>, %arg22: memref<64x1xf32, #tpu.memory_space<vmem>>, %arg23: memref<1x1xf32, #tpu.memory_space<vmem>>, %arg24: memref<2x1xf32, #tpu.memory_space<vmem>>) attributes {dimension_semantics = [], scalar_prefetch = 0 : i64, scratch_operands = 0 : i64, tpu.core_type = #tpu.core_type<tc>} {
    %c0 = arith.constant 0 : index
    %c0_0 = arith.constant 0 : index
    %0 = vector.load %arg0[%c0, %c0_0] : memref<40x12xf32, #tpu.memory_space<vmem>>, vector<40x12xf32>
    %c0_1 = arith.constant 0 : index
    %c0_2 = arith.constant 0 : index
    %c0_3 = arith.constant 0 : index
    %1 = vector.load %arg1[%c0_1, %c0_2, %c0_3] : memref<5x40x40xf32, #tpu.memory_space<vmem>>, vector<1x40x40xf32>
    %2 = vector.shape_cast %1 : vector<1x40x40xf32> to vector<40x40xf32>
    %cst = arith.constant dense<0.000000e+00> : vector<40x12xf32>
    %3 = tpu.matmul %2, %0, %cst {dimension_numbers = #tpu.dot_dimension_numbers<[1], [0], [0], [1], [0, 0, 1, 1], [], []>} : vector<40x40xf32>, vector<40x12xf32>, vector<40x12xf32> -> vector<40x12xf32>
    %c0_4 = arith.constant 0 : index
    %c0_5 = arith.constant 0 : index
    %c0_6 = arith.constant 0 : index
    %4 = vector.load %arg2[%c0_4, %c0_5, %c0_6] : memref<5x12x96xf32, #tpu.memory_space<vmem>>, vector<1x12x96xf32>
    %5 = vector.shape_cast %4 : vector<1x12x96xf32> to vector<12x96xf32>
    %cst_7 = arith.constant dense<0.000000e+00> : vector<40x96xf32>
    %6 = tpu.matmul %3, %5, %cst_7 {dimension_numbers = #tpu.dot_dimension_numbers<[1], [0], [0], [1], [0, 0, 1, 1], [], []>} : vector<40x12xf32>, vector<12x96xf32>, vector<40x96xf32> -> vector<40x96xf32>
    %c1 = arith.constant 1 : index
    %c0_8 = arith.constant 0 : index
    %c0_9 = arith.constant 0 : index
    %7 = vector.load %arg1[%c1, %c0_8, %c0_9] : memref<5x40x40xf32, #tpu.memory_space<vmem>>, vector<1x40x40xf32>
    %8 = vector.shape_cast %7 : vector<1x40x40xf32> to vector<40x40xf32>
    %cst_10 = arith.constant dense<0.000000e+00> : vector<40x12xf32>
    %9 = tpu.matmul %8, %0, %cst_10 {dimension_numbers = #tpu.dot_dimension_numbers<[1], [0], [0], [1], [0, 0, 1, 1], [], []>} : vector<40x40xf32>, vector<40x12xf32>, vector<40x12xf32> -> vector<40x12xf32>
    %c1_11 = arith.constant 1 : index
    %c0_12 = arith.constant 0 : index
    %c0_13 = arith.constant 0 : index
    %10 = vector.load %arg2[%c1_11, %c0_12, %c0_13] : memref<5x12x96xf32, #tpu.memory_space<vmem>>, vector<1x12x96xf32>
    %11 = vector.shape_cast %10 : vector<1x12x96xf32> to vector<12x96xf32>
    %cst_14 = arith.constant dense<0.000000e+00> : vector<40x96xf32>
    %12 = tpu.matmul %9, %11, %cst_14 {dimension_numbers = #tpu.dot_dimension_numbers<[1], [0], [0], [1], [0, 0, 1, 1], [], []>} : vector<40x12xf32>, vector<12x96xf32>, vector<40x96xf32> -> vector<40x96xf32>
    %13 = arith.addf %6, %12 : vector<40x96xf32>
    %c2 = arith.constant 2 : index
    %c0_15 = arith.constant 0 : index
    %c0_16 = arith.constant 0 : index
    %14 = vector.load %arg1[%c2, %c0_15, %c0_16] : memref<5x40x40xf32, #tpu.memory_space<vmem>>, vector<1x40x40xf32>
    %15 = vector.shape_cast %14 : vector<1x40x40xf32> to vector<40x40xf32>
    %cst_17 = arith.constant dense<0.000000e+00> : vector<40x12xf32>
    %16 = tpu.matmul %15, %0, %cst_17 {dimension_numbers = #tpu.dot_dimension_numbers<[1], [0], [0], [1], [0, 0, 1, 1], [], []>} : vector<40x40xf32>, vector<40x12xf32>, vector<40x12xf32> -> vector<40x12xf32>
    %c2_18 = arith.constant 2 : index
    %c0_19 = arith.constant 0 : index
    %c0_20 = arith.constant 0 : index
    %17 = vector.load %arg2[%c2_18, %c0_19, %c0_20] : memref<5x12x96xf32, #tpu.memory_space<vmem>>, vector<1x12x96xf32>
    %18 = vector.shape_cast %17 : vector<1x12x96xf32> to vector<12x96xf32>
    %cst_21 = arith.constant dense<0.000000e+00> : vector<40x96xf32>
    %19 = tpu.matmul %16, %18, %cst_21 {dimension_numbers = #tpu.dot_dimension_numbers<[1], [0], [0], [1], [0, 0, 1, 1], [], []>} : vector<40x12xf32>, vector<12x96xf32>, vector<40x96xf32> -> vector<40x96xf32>
    %20 = arith.addf %13, %19 : vector<40x96xf32>
    %c3 = arith.constant 3 : index
    %c0_22 = arith.constant 0 : index
    %c0_23 = arith.constant 0 : index
    %21 = vector.load %arg1[%c3, %c0_22, %c0_23] : memref<5x40x40xf32, #tpu.memory_space<vmem>>, vector<1x40x40xf32>
    %22 = vector.shape_cast %21 : vector<1x40x40xf32> to vector<40x40xf32>
    %cst_24 = arith.constant dense<0.000000e+00> : vector<40x12xf32>
    %23 = tpu.matmul %22, %0, %cst_24 {dimension_numbers = #tpu.dot_dimension_numbers<[1], [0], [0], [1], [0, 0, 1, 1], [], []>} : vector<40x40xf32>, vector<40x12xf32>, vector<40x12xf32> -> vector<40x12xf32>
    %c3_25 = arith.constant 3 : index
    %c0_26 = arith.constant 0 : index
    %c0_27 = arith.constant 0 : index
    %24 = vector.load %arg2[%c3_25, %c0_26, %c0_27] : memref<5x12x96xf32, #tpu.memory_space<vmem>>, vector<1x12x96xf32>
    %25 = vector.shape_cast %24 : vector<1x12x96xf32> to vector<12x96xf32>
    %cst_28 = arith.constant dense<0.000000e+00> : vector<40x96xf32>
    %26 = tpu.matmul %23, %25, %cst_28 {dimension_numbers = #tpu.dot_dimension_numbers<[1], [0], [0], [1], [0, 0, 1, 1], [], []>} : vector<40x12xf32>, vector<12x96xf32>, vector<40x96xf32> -> vector<40x96xf32>
    %27 = arith.addf %20, %26 : vector<40x96xf32>
    %c4 = arith.constant 4 : index
    %c0_29 = arith.constant 0 : index
    %c0_30 = arith.constant 0 : index
    %28 = vector.load %arg1[%c4, %c0_29, %c0_30] : memref<5x40x40xf32, #tpu.memory_space<vmem>>, vector<1x40x40xf32>
    %29 = vector.shape_cast %28 : vector<1x40x40xf32> to vector<40x40xf32>
    %cst_31 = arith.constant dense<0.000000e+00> : vector<40x12xf32>
    %30 = tpu.matmul %29, %0, %cst_31 {dimension_numbers = #tpu.dot_dimension_numbers<[1], [0], [0], [1], [0, 0, 1, 1], [], []>} : vector<40x40xf32>, vector<40x12xf32>, vector<40x12xf32> -> vector<40x12xf32>
    %c4_32 = arith.constant 4 : index
    %c0_33 = arith.constant 0 : index
    %c0_34 = arith.constant 0 : index
    %31 = vector.load %arg2[%c4_32, %c0_33, %c0_34] : memref<5x12x96xf32, #tpu.memory_space<vmem>>, vector<1x12x96xf32>
    %32 = vector.shape_cast %31 : vector<1x12x96xf32> to vector<12x96xf32>
    %cst_35 = arith.constant dense<0.000000e+00> : vector<40x96xf32>
    %33 = tpu.matmul %30, %32, %cst_35 {dimension_numbers = #tpu.dot_dimension_numbers<[1], [0], [0], [1], [0, 0, 1, 1], [], []>} : vector<40x12xf32>, vector<12x96xf32>, vector<40x96xf32> -> vector<40x96xf32>
    %34 = arith.addf %27, %33 : vector<40x96xf32>
    %c0_36 = arith.constant 0 : index
    %c0_37 = arith.constant 0 : index
    %35 = vector.load %arg3[%c0_36, %c0_37] : memref<96x8xf32, #tpu.memory_space<vmem>>, vector<96x8xf32>
    %cst_38 = arith.constant dense<0.000000e+00> : vector<40x8xf32>
    %36 = tpu.matmul %34, %35, %cst_38 {dimension_numbers = #tpu.dot_dimension_numbers<[1], [0], [0], [1], [0, 0, 1, 1], [], []>} : vector<40x96xf32>, vector<96x8xf32>, vector<40x8xf32> -> vector<40x8xf32>
    %cst_39 = arith.constant dense<0.000000e+00> : vector<8xf32>
    %37 = vector.multi_reduction <add>, %36, %cst_39 [0] : vector<40x8xf32> to vector<8xf32>
    %38 = vector.shape_cast %37 : vector<8xf32> to vector<1x8xf32>
    %39 = arith.mulf %34, %34 : vector<40x96xf32>
    %c0_40 = arith.constant 0 : index
    %c0_41 = arith.constant 0 : index
    %40 = vector.load %arg3[%c0_40, %c0_41] : memref<96x8xf32, #tpu.memory_space<vmem>>, vector<96x8xf32>
    %cst_42 = arith.constant dense<0.000000e+00> : vector<40x8xf32>
    %41 = tpu.matmul %39, %40, %cst_42 {dimension_numbers = #tpu.dot_dimension_numbers<[1], [0], [0], [1], [0, 0, 1, 1], [], []>} : vector<40x96xf32>, vector<96x8xf32>, vector<40x8xf32> -> vector<40x8xf32>
    %cst_43 = arith.constant dense<0.000000e+00> : vector<8xf32>
    %42 = vector.multi_reduction <add>, %41, %cst_43 [0] : vector<40x8xf32> to vector<8xf32>
    %43 = vector.shape_cast %42 : vector<8xf32> to vector<1x8xf32>
    %cst_44 = arith.constant 4.800000e+02 : f32
    %44 = vector.broadcast %cst_44 : f32 to vector<1x8xf32>
    %45 = arith.divf %38, %44 : vector<1x8xf32>
    %cst_45 = arith.constant 4.800000e+02 : f32
    %46 = vector.broadcast %cst_45 : f32 to vector<1x8xf32>
    %47 = arith.divf %43, %46 : vector<1x8xf32>
    %48 = arith.mulf %45, %45 : vector<1x8xf32>
    %49 = arith.subf %47, %48 : vector<1x8xf32>
    %c0_46 = arith.constant 0 : index
    %c0_47 = arith.constant 0 : index
    %50 = vector.load %arg5[%c0_46, %c0_47] : memref<1x8xf32, #tpu.memory_space<vmem>>, vector<1x8xf32>
    %cst_48 = arith.constant 9.99999974E-6 : f32
    %51 = vector.broadcast %cst_48 : f32 to vector<1x8xf32>
    %52 = arith.addf %49, %51 : vector<1x8xf32>
    %53 = math.rsqrt %52 : vector<1x8xf32>
    %54 = arith.mulf %50, %53 : vector<1x8xf32>
    %c0_49 = arith.constant 0 : index
    %c0_50 = arith.constant 0 : index
    %55 = vector.load %arg6[%c0_49, %c0_50] : memref<1x8xf32, #tpu.memory_space<vmem>>, vector<1x8xf32>
    %56 = arith.mulf %45, %54 : vector<1x8xf32>
    %57 = arith.subf %55, %56 : vector<1x8xf32>
    %c0_51 = arith.constant 0 : index
    %c0_52 = arith.constant 0 : index
    %58 = vector.load %arg4[%c0_51, %c0_52] : memref<8x96xf32, #tpu.memory_space<vmem>>, vector<8x96xf32>
    %cst_53 = arith.constant dense<0.000000e+00> : vector<1x96xf32>
    %59 = tpu.matmul %54, %58, %cst_53 {dimension_numbers = #tpu.dot_dimension_numbers<[1], [0], [0], [1], [0, 0, 1, 1], [], []>} : vector<1x8xf32>, vector<8x96xf32>, vector<1x96xf32> -> vector<1x96xf32>
    %c0_54 = arith.constant 0 : index
    %c0_55 = arith.constant 0 : index
    %60 = vector.load %arg4[%c0_54, %c0_55] : memref<8x96xf32, #tpu.memory_space<vmem>>, vector<8x96xf32>
    %cst_56 = arith.constant dense<0.000000e+00> : vector<1x96xf32>
    %61 = tpu.matmul %57, %60, %cst_56 {dimension_numbers = #tpu.dot_dimension_numbers<[1], [0], [0], [1], [0, 0, 1, 1], [], []>} : vector<1x8xf32>, vector<8x96xf32>, vector<1x96xf32> -> vector<1x96xf32>
    %62 = vector.broadcast %59 : vector<1x96xf32> to vector<40x96xf32>
    %63 = arith.mulf %34, %62 : vector<40x96xf32>
    %64 = vector.broadcast %61 : vector<1x96xf32> to vector<40x96xf32>
    %65 = arith.addf %63, %64 : vector<40x96xf32>
    %cst_57 = arith.constant 0.000000e+00 : f32
    %66 = vector.broadcast %cst_57 : f32 to vector<40x96xf32>
    %67 = arith.maximumf %65, %66 : vector<40x96xf32>
    %c0_58 = arith.constant 0 : index
    %c0_59 = arith.constant 0 : index
    %c0_60 = arith.constant 0 : index
    %68 = vector.load %arg7[%c0_58, %c0_59, %c0_60] : memref<2x20x40xf32, #tpu.memory_space<vmem>>, vector<1x20x40xf32>
    %69 = vector.shape_cast %68 : vector<1x20x40xf32> to vector<20x40xf32>
    %cst_61 = arith.constant dense<0.000000e+00> : vector<20x96xf32>
    %70 = tpu.matmul %69, %67, %cst_61 {dimension_numbers = #tpu.dot_dimension_numbers<[1], [0], [0], [1], [0, 0, 1, 1], [], []>} : vector<20x40xf32>, vector<40x96xf32>, vector<20x96xf32> -> vector<20x96xf32>
    %c1_62 = arith.constant 1 : index
    %c0_63 = arith.constant 0 : index
    %c0_64 = arith.constant 0 : index
    %71 = vector.load %arg7[%c1_62, %c0_63, %c0_64] : memref<2x20x40xf32, #tpu.memory_space<vmem>>, vector<1x20x40xf32>
    %72 = vector.shape_cast %71 : vector<1x20x40xf32> to vector<20x40xf32>
    %cst_65 = arith.constant dense<0.000000e+00> : vector<20x96xf32>
    %73 = tpu.matmul %72, %67, %cst_65 {dimension_numbers = #tpu.dot_dimension_numbers<[1], [0], [0], [1], [0, 0, 1, 1], [], []>} : vector<20x40xf32>, vector<40x96xf32>, vector<20x96xf32> -> vector<20x96xf32>
    %74 = arith.maximumf %70, %73 : vector<20x96xf32>
    %c0_66 = arith.constant 0 : index
    %c0_67 = arith.constant 0 : index
    %c0_68 = arith.constant 0 : index
    %75 = vector.load %arg8[%c0_66, %c0_67, %c0_68] : memref<2x96x48xf32, #tpu.memory_space<vmem>>, vector<1x96x48xf32>
    %76 = vector.shape_cast %75 : vector<1x96x48xf32> to vector<96x48xf32>
    %cst_69 = arith.constant dense<0.000000e+00> : vector<20x48xf32>
    %77 = tpu.matmul %74, %76, %cst_69 {dimension_numbers = #tpu.dot_dimension_numbers<[1], [0], [0], [1], [0, 0, 1, 1], [], []>} : vector<20x96xf32>, vector<96x48xf32>, vector<20x48xf32> -> vector<20x48xf32>
    %c1_70 = arith.constant 1 : index
    %c0_71 = arith.constant 0 : index
    %c0_72 = arith.constant 0 : index
    %78 = vector.load %arg8[%c1_70, %c0_71, %c0_72] : memref<2x96x48xf32, #tpu.memory_space<vmem>>, vector<1x96x48xf32>
    %79 = vector.shape_cast %78 : vector<1x96x48xf32> to vector<96x48xf32>
    %cst_73 = arith.constant dense<0.000000e+00> : vector<20x48xf32>
    %80 = tpu.matmul %74, %79, %cst_73 {dimension_numbers = #tpu.dot_dimension_numbers<[1], [0], [0], [1], [0, 0, 1, 1], [], []>} : vector<20x96xf32>, vector<96x48xf32>, vector<20x48xf32> -> vector<20x48xf32>
    %81 = arith.maximumf %77, %80 : vector<20x48xf32>
    %c0_74 = arith.constant 0 : index
    %c0_75 = arith.constant 0 : index
    %c0_76 = arith.constant 0 : index
    %82 = vector.load %arg9[%c0_74, %c0_75, %c0_76] : memref<5x20x20xf32, #tpu.memory_space<vmem>>, vector<1x20x20xf32>
    %83 = vector.shape_cast %82 : vector<1x20x20xf32> to vector<20x20xf32>
    %cst_77 = arith.constant dense<0.000000e+00> : vector<20x48xf32>
    %84 = tpu.matmul %83, %81, %cst_77 {dimension_numbers = #tpu.dot_dimension_numbers<[1], [0], [0], [1], [0, 0, 1, 1], [], []>} : vector<20x20xf32>, vector<20x48xf32>, vector<20x48xf32> -> vector<20x48xf32>
    %c0_78 = arith.constant 0 : index
    %c0_79 = arith.constant 0 : index
    %c0_80 = arith.constant 0 : index
    %85 = vector.load %arg10[%c0_78, %c0_79, %c0_80] : memref<5x48x96xf32, #tpu.memory_space<vmem>>, vector<1x48x96xf32>
    %86 = vector.shape_cast %85 : vector<1x48x96xf32> to vector<48x96xf32>
    %cst_81 = arith.constant dense<0.000000e+00> : vector<20x96xf32>
    %87 = tpu.matmul %84, %86, %cst_81 {dimension_numbers = #tpu.dot_dimension_numbers<[1], [0], [0], [1], [0, 0, 1, 1], [], []>} : vector<20x48xf32>, vector<48x96xf32>, vector<20x96xf32> -> vector<20x96xf32>
    %c1_82 = arith.constant 1 : index
    %c0_83 = arith.constant 0 : index
    %c0_84 = arith.constant 0 : index
    %88 = vector.load %arg9[%c1_82, %c0_83, %c0_84] : memref<5x20x20xf32, #tpu.memory_space<vmem>>, vector<1x20x20xf32>
    %89 = vector.shape_cast %88 : vector<1x20x20xf32> to vector<20x20xf32>
    %cst_85 = arith.constant dense<0.000000e+00> : vector<20x48xf32>
    %90 = tpu.matmul %89, %81, %cst_85 {dimension_numbers = #tpu.dot_dimension_numbers<[1], [0], [0], [1], [0, 0, 1, 1], [], []>} : vector<20x20xf32>, vector<20x48xf32>, vector<20x48xf32> -> vector<20x48xf32>
    %c1_86 = arith.constant 1 : index
    %c0_87 = arith.constant 0 : index
    %c0_88 = arith.constant 0 : index
    %91 = vector.load %arg10[%c1_86, %c0_87, %c0_88] : memref<5x48x96xf32, #tpu.memory_space<vmem>>, vector<1x48x96xf32>
    %92 = vector.shape_cast %91 : vector<1x48x96xf32> to vector<48x96xf32>
    %cst_89 = arith.constant dense<0.000000e+00> : vector<20x96xf32>
    %93 = tpu.matmul %90, %92, %cst_89 {dimension_numbers = #tpu.dot_dimension_numbers<[1], [0], [0], [1], [0, 0, 1, 1], [], []>} : vector<20x48xf32>, vector<48x96xf32>, vector<20x96xf32> -> vector<20x96xf32>
    %94 = arith.addf %87, %93 : vector<20x96xf32>
    %c2_90 = arith.constant 2 : index
    %c0_91 = arith.constant 0 : index
    %c0_92 = arith.constant 0 : index
    %95 = vector.load %arg9[%c2_90, %c0_91, %c0_92] : memref<5x20x20xf32, #tpu.memory_space<vmem>>, vector<1x20x20xf32>
    %96 = vector.shape_cast %95 : vector<1x20x20xf32> to vector<20x20xf32>
    %cst_93 = arith.constant dense<0.000000e+00> : vector<20x48xf32>
    %97 = tpu.matmul %96, %81, %cst_93 {dimension_numbers = #tpu.dot_dimension_numbers<[1], [0], [0], [1], [0, 0, 1, 1], [], []>} : vector<20x20xf32>, vector<20x48xf32>, vector<20x48xf32> -> vector<20x48xf32>
    %c2_94 = arith.constant 2 : index
    %c0_95 = arith.constant 0 : index
    %c0_96 = arith.constant 0 : index
    %98 = vector.load %arg10[%c2_94, %c0_95, %c0_96] : memref<5x48x96xf32, #tpu.memory_space<vmem>>, vector<1x48x96xf32>
    %99 = vector.shape_cast %98 : vector<1x48x96xf32> to vector<48x96xf32>
    %cst_97 = arith.constant dense<0.000000e+00> : vector<20x96xf32>
    %100 = tpu.matmul %97, %99, %cst_97 {dimension_numbers = #tpu.dot_dimension_numbers<[1], [0], [0], [1], [0, 0, 1, 1], [], []>} : vector<20x48xf32>, vector<48x96xf32>, vector<20x96xf32> -> vector<20x96xf32>
    %101 = arith.addf %94, %100 : vector<20x96xf32>
    %c3_98 = arith.constant 3 : index
    %c0_99 = arith.constant 0 : index
    %c0_100 = arith.constant 0 : index
    %102 = vector.load %arg9[%c3_98, %c0_99, %c0_100] : memref<5x20x20xf32, #tpu.memory_space<vmem>>, vector<1x20x20xf32>
    %103 = vector.shape_cast %102 : vector<1x20x20xf32> to vector<20x20xf32>
    %cst_101 = arith.constant dense<0.000000e+00> : vector<20x48xf32>
    %104 = tpu.matmul %103, %81, %cst_101 {dimension_numbers = #tpu.dot_dimension_numbers<[1], [0], [0], [1], [0, 0, 1, 1], [], []>} : vector<20x20xf32>, vector<20x48xf32>, vector<20x48xf32> -> vector<20x48xf32>
    %c3_102 = arith.constant 3 : index
    %c0_103 = arith.constant 0 : index
    %c0_104 = arith.constant 0 : index
    %105 = vector.load %arg10[%c3_102, %c0_103, %c0_104] : memref<5x48x96xf32, #tpu.memory_space<vmem>>, vector<1x48x96xf32>
    %106 = vector.shape_cast %105 : vector<1x48x96xf32> to vector<48x96xf32>
    %cst_105 = arith.constant dense<0.000000e+00> : vector<20x96xf32>
    %107 = tpu.matmul %104, %106, %cst_105 {dimension_numbers = #tpu.dot_dimension_numbers<[1], [0], [0], [1], [0, 0, 1, 1], [], []>} : vector<20x48xf32>, vector<48x96xf32>, vector<20x96xf32> -> vector<20x96xf32>
    %108 = arith.addf %101, %107 : vector<20x96xf32>
    %c4_106 = arith.constant 4 : index
    %c0_107 = arith.constant 0 : index
    %c0_108 = arith.constant 0 : index
    %109 = vector.load %arg9[%c4_106, %c0_107, %c0_108] : memref<5x20x20xf32, #tpu.memory_space<vmem>>, vector<1x20x20xf32>
    %110 = vector.shape_cast %109 : vector<1x20x20xf32> to vector<20x20xf32>
    %cst_109 = arith.constant dense<0.000000e+00> : vector<20x48xf32>
    %111 = tpu.matmul %110, %81, %cst_109 {dimension_numbers = #tpu.dot_dimension_numbers<[1], [0], [0], [1], [0, 0, 1, 1], [], []>} : vector<20x20xf32>, vector<20x48xf32>, vector<20x48xf32> -> vector<20x48xf32>
    %c4_110 = arith.constant 4 : index
    %c0_111 = arith.constant 0 : index
    %c0_112 = arith.constant 0 : index
    %112 = vector.load %arg10[%c4_110, %c0_111, %c0_112] : memref<5x48x96xf32, #tpu.memory_space<vmem>>, vector<1x48x96xf32>
    %113 = vector.shape_cast %112 : vector<1x48x96xf32> to vector<48x96xf32>
    %cst_113 = arith.constant dense<0.000000e+00> : vector<20x96xf32>
    %114 = tpu.matmul %111, %113, %cst_113 {dimension_numbers = #tpu.dot_dimension_numbers<[1], [0], [0], [1], [0, 0, 1, 1], [], []>} : vector<20x48xf32>, vector<48x96xf32>, vector<20x96xf32> -> vector<20x96xf32>
    %115 = arith.addf %108, %114 : vector<20x96xf32>
    %c0_114 = arith.constant 0 : index
    %c0_115 = arith.constant 0 : index
    %116 = vector.load %arg11[%c0_114, %c0_115] : memref<96x16xf32, #tpu.memory_space<vmem>>, vector<96x16xf32>
    %cst_116 = arith.constant dense<0.000000e+00> : vector<20x16xf32>
    %117 = tpu.matmul %115, %116, %cst_116 {dimension_numbers = #tpu.dot_dimension_numbers<[1], [0], [0], [1], [0, 0, 1, 1], [], []>} : vector<20x96xf32>, vector<96x16xf32>, vector<20x16xf32> -> vector<20x16xf32>
    %cst_117 = arith.constant dense<0.000000e+00> : vector<16xf32>
    %118 = vector.multi_reduction <add>, %117, %cst_117 [0] : vector<20x16xf32> to vector<16xf32>
    %119 = vector.shape_cast %118 : vector<16xf32> to vector<1x16xf32>
    %120 = arith.mulf %115, %115 : vector<20x96xf32>
    %c0_118 = arith.constant 0 : index
    %c0_119 = arith.constant 0 : index
    %121 = vector.load %arg11[%c0_118, %c0_119] : memref<96x16xf32, #tpu.memory_space<vmem>>, vector<96x16xf32>
    %cst_120 = arith.constant dense<0.000000e+00> : vector<20x16xf32>
    %122 = tpu.matmul %120, %121, %cst_120 {dimension_numbers = #tpu.dot_dimension_numbers<[1], [0], [0], [1], [0, 0, 1, 1], [], []>} : vector<20x96xf32>, vector<96x16xf32>, vector<20x16xf32> -> vector<20x16xf32>
    %cst_121 = arith.constant dense<0.000000e+00> : vector<16xf32>
    %123 = vector.multi_reduction <add>, %122, %cst_121 [0] : vector<20x16xf32> to vector<16xf32>
    %124 = vector.shape_cast %123 : vector<16xf32> to vector<1x16xf32>
    %cst_122 = arith.constant 1.200000e+02 : f32
    %125 = vector.broadcast %cst_122 : f32 to vector<1x16xf32>
    %126 = arith.divf %119, %125 : vector<1x16xf32>
    %cst_123 = arith.constant 1.200000e+02 : f32
    %127 = vector.broadcast %cst_123 : f32 to vector<1x16xf32>
    %128 = arith.divf %124, %127 : vector<1x16xf32>
    %129 = arith.mulf %126, %126 : vector<1x16xf32>
    %130 = arith.subf %128, %129 : vector<1x16xf32>
    %c0_124 = arith.constant 0 : index
    %c0_125 = arith.constant 0 : index
    %131 = vector.load %arg13[%c0_124, %c0_125] : memref<1x16xf32, #tpu.memory_space<vmem>>, vector<1x16xf32>
    %cst_126 = arith.constant 9.99999974E-6 : f32
    %132 = vector.broadcast %cst_126 : f32 to vector<1x16xf32>
    %133 = arith.addf %130, %132 : vector<1x16xf32>
    %134 = math.rsqrt %133 : vector<1x16xf32>
    %135 = arith.mulf %131, %134 : vector<1x16xf32>
    %c0_127 = arith.constant 0 : index
    %c0_128 = arith.constant 0 : index
    %136 = vector.load %arg14[%c0_127, %c0_128] : memref<1x16xf32, #tpu.memory_space<vmem>>, vector<1x16xf32>
    %137 = arith.mulf %126, %135 : vector<1x16xf32>
    %138 = arith.subf %136, %137 : vector<1x16xf32>
    %c0_129 = arith.constant 0 : index
    %c0_130 = arith.constant 0 : index
    %139 = vector.load %arg12[%c0_129, %c0_130] : memref<16x96xf32, #tpu.memory_space<vmem>>, vector<16x96xf32>
    %cst_131 = arith.constant dense<0.000000e+00> : vector<1x96xf32>
    %140 = tpu.matmul %135, %139, %cst_131 {dimension_numbers = #tpu.dot_dimension_numbers<[1], [0], [0], [1], [0, 0, 1, 1], [], []>} : vector<1x16xf32>, vector<16x96xf32>, vector<1x96xf32> -> vector<1x96xf32>
    %c0_132 = arith.constant 0 : index
    %c0_133 = arith.constant 0 : index
    %141 = vector.load %arg12[%c0_132, %c0_133] : memref<16x96xf32, #tpu.memory_space<vmem>>, vector<16x96xf32>
    %cst_134 = arith.constant dense<0.000000e+00> : vector<1x96xf32>
    %142 = tpu.matmul %138, %141, %cst_134 {dimension_numbers = #tpu.dot_dimension_numbers<[1], [0], [0], [1], [0, 0, 1, 1], [], []>} : vector<1x16xf32>, vector<16x96xf32>, vector<1x96xf32> -> vector<1x96xf32>
    %143 = vector.broadcast %140 : vector<1x96xf32> to vector<20x96xf32>
    %144 = arith.mulf %115, %143 : vector<20x96xf32>
    %145 = vector.broadcast %142 : vector<1x96xf32> to vector<20x96xf32>
    %146 = arith.addf %144, %145 : vector<20x96xf32>
    %cst_135 = arith.constant 0.000000e+00 : f32
    %147 = vector.broadcast %cst_135 : f32 to vector<20x96xf32>
    %148 = arith.maximumf %146, %147 : vector<20x96xf32>
    %c0_136 = arith.constant 0 : index
    %c0_137 = arith.constant 0 : index
    %c0_138 = arith.constant 0 : index
    %149 = vector.load %arg15[%c0_136, %c0_137, %c0_138] : memref<2x10x20xf32, #tpu.memory_space<vmem>>, vector<1x10x20xf32>
    %150 = vector.shape_cast %149 : vector<1x10x20xf32> to vector<10x20xf32>
    %cst_139 = arith.constant dense<0.000000e+00> : vector<10x96xf32>
    %151 = tpu.matmul %150, %148, %cst_139 {dimension_numbers = #tpu.dot_dimension_numbers<[1], [0], [0], [1], [0, 0, 1, 1], [], []>} : vector<10x20xf32>, vector<20x96xf32>, vector<10x96xf32> -> vector<10x96xf32>
    %c1_140 = arith.constant 1 : index
    %c0_141 = arith.constant 0 : index
    %c0_142 = arith.constant 0 : index
    %152 = vector.load %arg15[%c1_140, %c0_141, %c0_142] : memref<2x10x20xf32, #tpu.memory_space<vmem>>, vector<1x10x20xf32>
    %153 = vector.shape_cast %152 : vector<1x10x20xf32> to vector<10x20xf32>
    %cst_143 = arith.constant dense<0.000000e+00> : vector<10x96xf32>
    %154 = tpu.matmul %153, %148, %cst_143 {dimension_numbers = #tpu.dot_dimension_numbers<[1], [0], [0], [1], [0, 0, 1, 1], [], []>} : vector<10x20xf32>, vector<20x96xf32>, vector<10x96xf32> -> vector<10x96xf32>
    %155 = arith.maximumf %151, %154 : vector<10x96xf32>
    %c0_144 = arith.constant 0 : index
    %c0_145 = arith.constant 0 : index
    %c0_146 = arith.constant 0 : index
    %156 = vector.load %arg16[%c0_144, %c0_145, %c0_146] : memref<2x96x48xf32, #tpu.memory_space<vmem>>, vector<1x96x48xf32>
    %157 = vector.shape_cast %156 : vector<1x96x48xf32> to vector<96x48xf32>
    %cst_147 = arith.constant dense<0.000000e+00> : vector<10x48xf32>
    %158 = tpu.matmul %155, %157, %cst_147 {dimension_numbers = #tpu.dot_dimension_numbers<[1], [0], [0], [1], [0, 0, 1, 1], [], []>} : vector<10x96xf32>, vector<96x48xf32>, vector<10x48xf32> -> vector<10x48xf32>
    %c1_148 = arith.constant 1 : index
    %c0_149 = arith.constant 0 : index
    %c0_150 = arith.constant 0 : index
    %159 = vector.load %arg16[%c1_148, %c0_149, %c0_150] : memref<2x96x48xf32, #tpu.memory_space<vmem>>, vector<1x96x48xf32>
    %160 = vector.shape_cast %159 : vector<1x96x48xf32> to vector<96x48xf32>
    %cst_151 = arith.constant dense<0.000000e+00> : vector<10x48xf32>
    %161 = tpu.matmul %155, %160, %cst_151 {dimension_numbers = #tpu.dot_dimension_numbers<[1], [0], [0], [1], [0, 0, 1, 1], [], []>} : vector<10x96xf32>, vector<96x48xf32>, vector<10x48xf32> -> vector<10x48xf32>
    %162 = arith.maximumf %158, %161 : vector<10x48xf32>
    %c0_152 = arith.constant 0 : index
    %c0_153 = arith.constant 0 : index
    %163 = vector.load %arg19[%c0_152, %c0_153] : memref<1x128xf32, #tpu.memory_space<vmem>>, vector<1x128xf32>
    %c0_154 = arith.constant 0 : index
    %c0_155 = arith.constant 0 : index
    %c0_156 = arith.constant 0 : index
    %164 = vector.load %arg17[%c0_154, %c0_155, %c0_156] : memref<5x2x10xf32, #tpu.memory_space<vmem>>, vector<1x2x10xf32>
    %165 = vector.shape_cast %164 : vector<1x2x10xf32> to vector<2x10xf32>
    %cst_157 = arith.constant dense<0.000000e+00> : vector<2x48xf32>
    %166 = tpu.matmul %165, %162, %cst_157 {dimension_numbers = #tpu.dot_dimension_numbers<[1], [0], [0], [1], [0, 0, 1, 1], [], []>} : vector<2x10xf32>, vector<10x48xf32>, vector<2x48xf32> -> vector<2x48xf32>
    %c0_158 = arith.constant 0 : index
    %c0_159 = arith.constant 0 : index
    %c0_160 = arith.constant 0 : index
    %167 = vector.load %arg18[%c0_158, %c0_159, %c0_160] : memref<5x48x128xf32, #tpu.memory_space<vmem>>, vector<1x48x128xf32>
    %168 = vector.shape_cast %167 : vector<1x48x128xf32> to vector<48x128xf32>
    %cst_161 = arith.constant dense<0.000000e+00> : vector<2x128xf32>
    %169 = tpu.matmul %166, %168, %cst_161 {dimension_numbers = #tpu.dot_dimension_numbers<[1], [0], [0], [1], [0, 0, 1, 1], [], []>} : vector<2x48xf32>, vector<48x128xf32>, vector<2x128xf32> -> vector<2x128xf32>
    %170 = vector.broadcast %163 : vector<1x128xf32> to vector<2x128xf32>
    %171 = arith.addf %170, %169 : vector<2x128xf32>
    %c1_162 = arith.constant 1 : index
    %c0_163 = arith.constant 0 : index
    %c0_164 = arith.constant 0 : index
    %172 = vector.load %arg17[%c1_162, %c0_163, %c0_164] : memref<5x2x10xf32, #tpu.memory_space<vmem>>, vector<1x2x10xf32>
    %173 = vector.shape_cast %172 : vector<1x2x10xf32> to vector<2x10xf32>
    %cst_165 = arith.constant dense<0.000000e+00> : vector<2x48xf32>
    %174 = tpu.matmul %173, %162, %cst_165 {dimension_numbers = #tpu.dot_dimension_numbers<[1], [0], [0], [1], [0, 0, 1, 1], [], []>} : vector<2x10xf32>, vector<10x48xf32>, vector<2x48xf32> -> vector<2x48xf32>
    %c1_166 = arith.constant 1 : index
    %c0_167 = arith.constant 0 : index
    %c0_168 = arith.constant 0 : index
    %175 = vector.load %arg18[%c1_166, %c0_167, %c0_168] : memref<5x48x128xf32, #tpu.memory_space<vmem>>, vector<1x48x128xf32>
    %176 = vector.shape_cast %175 : vector<1x48x128xf32> to vector<48x128xf32>
    %cst_169 = arith.constant dense<0.000000e+00> : vector<2x128xf32>
    %177 = tpu.matmul %174, %176, %cst_169 {dimension_numbers = #tpu.dot_dimension_numbers<[1], [0], [0], [1], [0, 0, 1, 1], [], []>} : vector<2x48xf32>, vector<48x128xf32>, vector<2x128xf32> -> vector<2x128xf32>
    %178 = arith.addf %171, %177 : vector<2x128xf32>
    %c2_170 = arith.constant 2 : index
    %c0_171 = arith.constant 0 : index
    %c0_172 = arith.constant 0 : index
    %179 = vector.load %arg17[%c2_170, %c0_171, %c0_172] : memref<5x2x10xf32, #tpu.memory_space<vmem>>, vector<1x2x10xf32>
    %180 = vector.shape_cast %179 : vector<1x2x10xf32> to vector<2x10xf32>
    %cst_173 = arith.constant dense<0.000000e+00> : vector<2x48xf32>
    %181 = tpu.matmul %180, %162, %cst_173 {dimension_numbers = #tpu.dot_dimension_numbers<[1], [0], [0], [1], [0, 0, 1, 1], [], []>} : vector<2x10xf32>, vector<10x48xf32>, vector<2x48xf32> -> vector<2x48xf32>
    %c2_174 = arith.constant 2 : index
    %c0_175 = arith.constant 0 : index
    %c0_176 = arith.constant 0 : index
    %182 = vector.load %arg18[%c2_174, %c0_175, %c0_176] : memref<5x48x128xf32, #tpu.memory_space<vmem>>, vector<1x48x128xf32>
    %183 = vector.shape_cast %182 : vector<1x48x128xf32> to vector<48x128xf32>
    %cst_177 = arith.constant dense<0.000000e+00> : vector<2x128xf32>
    %184 = tpu.matmul %181, %183, %cst_177 {dimension_numbers = #tpu.dot_dimension_numbers<[1], [0], [0], [1], [0, 0, 1, 1], [], []>} : vector<2x48xf32>, vector<48x128xf32>, vector<2x128xf32> -> vector<2x128xf32>
    %185 = arith.addf %178, %184 : vector<2x128xf32>
    %c3_178 = arith.constant 3 : index
    %c0_179 = arith.constant 0 : index
    %c0_180 = arith.constant 0 : index
    %186 = vector.load %arg17[%c3_178, %c0_179, %c0_180] : memref<5x2x10xf32, #tpu.memory_space<vmem>>, vector<1x2x10xf32>
    %187 = vector.shape_cast %186 : vector<1x2x10xf32> to vector<2x10xf32>
    %cst_181 = arith.constant dense<0.000000e+00> : vector<2x48xf32>
    %188 = tpu.matmul %187, %162, %cst_181 {dimension_numbers = #tpu.dot_dimension_numbers<[1], [0], [0], [1], [0, 0, 1, 1], [], []>} : vector<2x10xf32>, vector<10x48xf32>, vector<2x48xf32> -> vector<2x48xf32>
    %c3_182 = arith.constant 3 : index
    %c0_183 = arith.constant 0 : index
    %c0_184 = arith.constant 0 : index
    %189 = vector.load %arg18[%c3_182, %c0_183, %c0_184] : memref<5x48x128xf32, #tpu.memory_space<vmem>>, vector<1x48x128xf32>
    %190 = vector.shape_cast %189 : vector<1x48x128xf32> to vector<48x128xf32>
    %cst_185 = arith.constant dense<0.000000e+00> : vector<2x128xf32>
    %191 = tpu.matmul %188, %190, %cst_185 {dimension_numbers = #tpu.dot_dimension_numbers<[1], [0], [0], [1], [0, 0, 1, 1], [], []>} : vector<2x48xf32>, vector<48x128xf32>, vector<2x128xf32> -> vector<2x128xf32>
    %192 = arith.addf %185, %191 : vector<2x128xf32>
    %c4_186 = arith.constant 4 : index
    %c0_187 = arith.constant 0 : index
    %c0_188 = arith.constant 0 : index
    %193 = vector.load %arg17[%c4_186, %c0_187, %c0_188] : memref<5x2x10xf32, #tpu.memory_space<vmem>>, vector<1x2x10xf32>
    %194 = vector.shape_cast %193 : vector<1x2x10xf32> to vector<2x10xf32>
    %cst_189 = arith.constant dense<0.000000e+00> : vector<2x48xf32>
    %195 = tpu.matmul %194, %162, %cst_189 {dimension_numbers = #tpu.dot_dimension_numbers<[1], [0], [0], [1], [0, 0, 1, 1], [], []>} : vector<2x10xf32>, vector<10x48xf32>, vector<2x48xf32> -> vector<2x48xf32>
    %c4_190 = arith.constant 4 : index
    %c0_191 = arith.constant 0 : index
    %c0_192 = arith.constant 0 : index
    %196 = vector.load %arg18[%c4_190, %c0_191, %c0_192] : memref<5x48x128xf32, #tpu.memory_space<vmem>>, vector<1x48x128xf32>
    %197 = vector.shape_cast %196 : vector<1x48x128xf32> to vector<48x128xf32>
    %cst_193 = arith.constant dense<0.000000e+00> : vector<2x128xf32>
    %198 = tpu.matmul %195, %197, %cst_193 {dimension_numbers = #tpu.dot_dimension_numbers<[1], [0], [0], [1], [0, 0, 1, 1], [], []>} : vector<2x48xf32>, vector<48x128xf32>, vector<2x128xf32> -> vector<2x128xf32>
    %199 = arith.addf %192, %198 : vector<2x128xf32>
    %cst_194 = arith.constant 0.000000e+00 : f32
    %200 = vector.broadcast %cst_194 : f32 to vector<2x128xf32>
    %201 = arith.maximumf %199, %200 : vector<2x128xf32>
    %c0_195 = arith.constant 0 : index
    %c0_196 = arith.constant 0 : index
    %202 = vector.load %arg20[%c0_195, %c0_196] : memref<128x64xf32, #tpu.memory_space<vmem>>, vector<128x64xf32>
    %cst_197 = arith.constant dense<0.000000e+00> : vector<2x64xf32>
    %203 = tpu.matmul %201, %202, %cst_197 {dimension_numbers = #tpu.dot_dimension_numbers<[1], [0], [0], [1], [0, 0, 1, 1], [], []>} : vector<2x128xf32>, vector<128x64xf32>, vector<2x64xf32> -> vector<2x64xf32>
    %c0_198 = arith.constant 0 : index
    %c0_199 = arith.constant 0 : index
    %204 = vector.load %arg21[%c0_198, %c0_199] : memref<1x64xf32, #tpu.memory_space<vmem>>, vector<1x64xf32>
    %205 = vector.broadcast %204 : vector<1x64xf32> to vector<2x64xf32>
    %206 = arith.addf %203, %205 : vector<2x64xf32>
    %cst_200 = arith.constant 0.000000e+00 : f32
    %207 = vector.broadcast %cst_200 : f32 to vector<2x64xf32>
    %208 = arith.maximumf %206, %207 : vector<2x64xf32>
    %c0_201 = arith.constant 0 : index
    %c0_202 = arith.constant 0 : index
    %209 = vector.load %arg22[%c0_201, %c0_202] : memref<64x1xf32, #tpu.memory_space<vmem>>, vector<64x1xf32>
    %cst_203 = arith.constant dense<0.000000e+00> : vector<2x1xf32>
    %210 = tpu.matmul %208, %209, %cst_203 {dimension_numbers = #tpu.dot_dimension_numbers<[1], [0], [0], [1], [0, 0, 1, 1], [], []>} : vector<2x64xf32>, vector<64x1xf32>, vector<2x1xf32> -> vector<2x1xf32>
    %c0_204 = arith.constant 0 : index
    %c0_205 = arith.constant 0 : index
    %211 = vector.load %arg23[%c0_204, %c0_205] : memref<1x1xf32, #tpu.memory_space<vmem>>, vector<1x1xf32>
    %212 = vector.broadcast %211 : vector<1x1xf32> to vector<2x1xf32>
    %213 = arith.addf %210, %212 : vector<2x1xf32>
    %c0_206 = arith.constant 0 : index
    %c0_207 = arith.constant 0 : index
    %214 = vector.load %arg24[%c0_206, %c0_207] : memref<2x1xf32, #tpu.memory_space<vmem>>, vector<2x1xf32>
    tpu.vector_store %arg24[%c0_206, %c0_207], %213 {strides = array<i32>} : memref<2x1xf32, #tpu.memory_space<vmem>>, vector<2x1xf32>,
    return
  }
}

</mosaic_0001>

<llo_original>
// kernel: convnet_forward.1
$region0: #{convnet_forward.1}
  #allocation0 [shape = 'u32[]', space=smem, size = 0x4, offset = 0x4, fixed_abs, tag = 'smem constant byte address 0x4 - core index']
  #allocation1 [shape = 'u32[72,128]{1,0:T(1,128)}', space=vmem, size = 0x9000, scoped, tag = 'internal scratch']
  #allocation2 [shape = 'f32[1,1]{1,0:T(1,128)S(1)}', space=vmem, size = 0x200, scoped, tag = 'scoped memory for convnet_forward.1']
  %s0 = inlined_call_operand.vmem [shape: f32[40,12], index: 0, kind: input, shape index: {}]
  %s1 = inlined_call_operand.vmem [shape: f32[5,40,40], index: 1, kind: input, shape index: {}]
  %s2 = inlined_call_operand.vmem [shape: f32[5,12,96], index: 2, kind: input, shape index: {}]
  %s3 = inlined_call_operand.vmem [shape: f32[96,8], index: 3, kind: input, shape index: {}]
  %s4 = inlined_call_operand.vmem [shape: f32[8,96], index: 4, kind: input, shape index: {}]
  %s5 = inlined_call_operand.vmem [shape: f32[1,8], index: 5, kind: input, shape index: {}]
  %s6 = inlined_call_operand.vmem [shape: f32[1,8], index: 6, kind: input, shape index: {}]
  %s7 = inlined_call_operand.vmem [shape: f32[2,20,40], index: 7, kind: input, shape index: {}]
  %s8 = inlined_call_operand.vmem [shape: f32[2,96,48], index: 8, kind: input, shape index: {}]
  %s9 = inlined_call_operand.vmem [shape: f32[5,20,20], index: 9, kind: input, shape index: {}]
  %s10 = inlined_call_operand.vmem [shape: f32[5,48,96], index: 10, kind: input, shape index: {}]
  %s11 = inlined_call_operand.vmem [shape: f32[96,16], index: 11, kind: input, shape index: {}]
  %s12 = inlined_call_operand.vmem [shape: f32[16,96], index: 12, kind: input, shape index: {}]
  %s13 = inlined_call_operand.vmem [shape: f32[1,16], index: 13, kind: input, shape index: {}]
  %s14 = inlined_call_operand.vmem [shape: f32[1,16], index: 14, kind: input, shape index: {}]
  %s15 = inlined_call_operand.vmem [shape: f32[2,10,20], index: 15, kind: input, shape index: {}]
  %s16 = inlined_call_operand.vmem [shape: f32[2,96,48], index: 16, kind: input, shape index: {}]
  %s17 = inlined_call_operand.vmem [shape: f32[5,2,10], index: 17, kind: input, shape index: {}]
  %s18 = inlined_call_operand.vmem [shape: f32[5,48,128], index: 18, kind: input, shape index: {}]
  %s19 = inlined_call_operand.vmem [shape: f32[1,128], index: 19, kind: input, shape index: {}]
  %s20 = inlined_call_operand.vmem [shape: f32[128,64], index: 20, kind: input, shape index: {}]
  %s21 = inlined_call_operand.vmem [shape: f32[1,64], index: 21, kind: input, shape index: {}]
  %s22 = inlined_call_operand.vmem [shape: f32[64,1], index: 22, kind: input, shape index: {}]
  %s23 = inlined_call_operand.<no memory space> [shape: f32[1,1], index: 23, kind: input, shape index: {}]
  %s24 = inlined_call_operand.vmem [shape: f32[2,1], index: 24, kind: output, shape index: {}]
  %s25 = sld [smem:[#allocation0]]
  $region106: #{convnet_forward.1} parent=0
    _
  %s27 = ssub.s32 1, %s25
  %s28 = scalar_select 0, %s27, %s25
  %v29 = vstv %s23
  %30 = vst [vmem:[#allocation2] sm:$0x1] %v29
  // Predicated region
  $region2: #{convnet_forward.1} parent=0 // pred_check
    _
  $region3: #{convnet_forward.1} parent=0 // pred_check_branch
    %32 = sbr.rel (0) target = $region5
  $region4: #{convnet_forward.1} parent=0 // pred_region
    _
  $region5: #{convnet_forward.1} parent=0 // pred_fallthru
    _
  // Predicated region
  $region6: #{convnet_forward.1} parent=0 // pred_check
    _
  $region7: #{convnet_forward.1} parent=0 // pred_check_branch
    %34 = sbr.rel (0) target = $region9
  $region8: #{convnet_forward.1} parent=0 // pred_region
    _
  $region9: #{convnet_forward.1} parent=0 // pred_fallthru
    _
  // Predicated region
  $region10: #{convnet_forward.1} parent=0 // pred_check
    _
  $region11: #{convnet_forward.1} parent=0 // pred_check_branch
    %36 = sbr.rel (0) target = $region13
  $region12: #{convnet_forward.1} parent=0 // pred_region
    _
  $region13: #{convnet_forward.1} parent=0 // pred_fallthru
    _
  // Predicated region
  $region14: #{convnet_forward.1} parent=0 // pred_check
    _
  $region15: #{convnet_forward.1} parent=0 // pred_check_branch
    %38 = sbr.rel (0) target = $region17
  $region16: #{convnet_forward.1} parent=0 // pred_region
    _
  $region17: #{convnet_forward.1} parent=0 // pred_fallthru
    _
  // Predicated region
  $region18: #{convnet_forward.1} parent=0 // pred_check
    _
  $region19: #{convnet_forward.1} parent=0 // pred_check_branch
    %40 = sbr.rel (0) target = $region21
  $region20: #{convnet_forward.1} parent=0 // pred_region
    _
  $region21: #{convnet_forward.1} parent=0 // pred_fallthru
    _
  // Predicated region
  $region22: #{convnet_forward.1} parent=0 // pred_check
    _
  $region23: #{convnet_forward.1} parent=0 // pred_check_branch
    %42 = sbr.rel (0) target = $region25
  $region24: #{convnet_forward.1} parent=0 // pred_region
    _
  $region25: #{convnet_forward.1} parent=0 // pred_fallthru
    _
  // Predicated region
  $region26: #{convnet_forward.1} parent=0 // pred_check
    _
  $region27: #{convnet_forward.1} parent=0 // pred_check_branch
    %44 = sbr.rel (0) target = $region29
  $region28: #{convnet_forward.1} parent=0 // pred_region
    _
  $region29: #{convnet_forward.1} parent=0 // pred_fallthru
    _
  // Predicated region
  $region30: #{convnet_forward.1} parent=0 // pred_check
    _
  $region31: #{convnet_forward.1} parent=0 // pred_check_branch
    %46 = sbr.rel (0) target = $region33
  $region32: #{convnet_forward.1} parent=0 // pred_region
    _
  $region33: #{convnet_forward.1} parent=0 // pred_fallthru
    _
  // Predicated region
  $region34: #{convnet_forward.1} parent=0 // pred_check
    _
  $region35: #{convnet_forward.1} parent=0 // pred_check_branch
    %48 = sbr.rel (0) target = $region37
  $region36: #{convnet_forward.1} parent=0 // pred_region
    _
  $region37: #{convnet_forward.1} parent=0 // pred_fallthru
    _
  // Predicated region
  $region38: #{convnet_forward.1} parent=0 // pred_check
    _
  $region39: #{convnet_forward.1} parent=0 // pred_check_branch
    %50 = sbr.rel (0) target = $region41
  $region40: #{convnet_forward.1} parent=0 // pred_region
    _
  $region41: #{convnet_forward.1} parent=0 // pred_fallthru
    _
  // Predicated region
  $region42: #{convnet_forward.1} parent=0 // pred_check
    _
  $region43: #{convnet_forward.1} parent=0 // pred_check_branch
    %52 = sbr.rel (0) target = $region45
  $region44: #{convnet_forward.1} parent=0 // pred_region
    _
  $region45: #{convnet_forward.1} parent=0 // pred_fallthru
    _
  // Predicated region
  $region46: #{convnet_forward.1} parent=0 // pred_check
    _
  $region47: #{convnet_forward.1} parent=0 // pred_check_branch
    %54 = sbr.rel (0) target = $region49
  $region48: #{convnet_forward.1} parent=0 // pred_region
    _
  $region49: #{convnet_forward.1} parent=0 // pred_fallthru
    _
  // Predicated region
  $region50: #{convnet_forward.1} parent=0 // pred_check
    _
  $region51: #{convnet_forward.1} parent=0 // pred_check_branch
    %56 = sbr.rel (0) target = $region53
  $region52: #{convnet_forward.1} parent=0 // pred_region
    _
  $region53: #{convnet_forward.1} parent=0 // pred_fallthru
    _
  // Predicated region
  $region54: #{convnet_forward.1} parent=0 // pred_check
    _
  $region55: #{convnet_forward.1} parent=0 // pred_check_branch
    %58 = sbr.rel (0) target = $region57
  $region56: #{convnet_forward.1} parent=0 // pred_region
    _
  $region57: #{convnet_forward.1} parent=0 // pred_fallthru
    _
  // Predicated region
  $region58: #{convnet_forward.1} parent=0 // pred_check
    _
  $region59: #{convnet_forward.1} parent=0 // pred_check_branch
    %60 = sbr.rel (0) target = $region61
  $region60: #{convnet_forward.1} parent=0 // pred_region
    _
  $region61: #{convnet_forward.1} parent=0 // pred_fallthru
    _
  // Predicated region
  $region62: #{convnet_forward.1} parent=0 // pred_check
    _
  $region63: #{convnet_forward.1} parent=0 // pred_check_branch
    %62 = sbr.rel (0) target = $region65
  $region64: #{convnet_forward.1} parent=0 // pred_region
    _
  $region65: #{convnet_forward.1} parent=0 // pred_fallthru
    _
  // Predicated region
  $region66: #{convnet_forward.1} parent=0 // pred_check
    _
  $region67: #{convnet_forward.1} parent=0 // pred_check_branch
    %64 = sbr.rel (0) target = $region69
  $region68: #{convnet_forward.1} parent=0 // pred_region
    _
  $region69: #{convnet_forward.1} parent=0 // pred_fallthru
    _
  // Predicated region
  $region70: #{convnet_forward.1} parent=0 // pred_check
    _
  $region71: #{convnet_forward.1} parent=0 // pred_check_branch
    %66 = sbr.rel (0) target = $region73
  $region72: #{convnet_forward.1} parent=0 // pred_region
    _
  $region73: #{convnet_forward.1} parent=0 // pred_fallthru
    _
  // Predicated region
  $region74: #{convnet_forward.1} parent=0 // pred_check
    _
  $region75: #{convnet_forward.1} parent=0 // pred_check_branch
    %68 = sbr.rel (0) target = $region77
  $region76: #{convnet_forward.1} parent=0 // pred_region
    _
  $region77: #{convnet_forward.1} parent=0 // pred_fallthru
    _
  // Predicated region
  $region78: #{convnet_forward.1} parent=0 // pred_check
    _
  $region79: #{convnet_forward.1} parent=0 // pred_check_branch
    %70 = sbr.rel (0) target = $region81
  $region80: #{convnet_forward.1} parent=0 // pred_region
    _
  $region81: #{convnet_forward.1} parent=0 // pred_fallthru
    _
  // Predicated region
  $region82: #{convnet_forward.1} parent=0 // pred_check
    _
  $region83: #{convnet_forward.1} parent=0 // pred_check_branch
    %72 = sbr.rel (0) target = $region85
  $region84: #{convnet_forward.1} parent=0 // pred_region
    _
  $region85: #{convnet_forward.1} parent=0 // pred_fallthru
    _
  // Predicated region
  $region86: #{convnet_forward.1} parent=0 // pred_check
    _
  $region87: #{convnet_forward.1} parent=0 // pred_check_branch
    %74 = sbr.rel (0) target = $region89
  $region88: #{convnet_forward.1} parent=0 // pred_region
    _
  $region89: #{convnet_forward.1} parent=0 // pred_fallthru
    _
  // Predicated region
  $region90: #{convnet_forward.1} parent=0 // pred_check
    _
  $region91: #{convnet_forward.1} parent=0 // pred_check_branch
    %76 = sbr.rel (0) target = $region93
  $region92: #{convnet_forward.1} parent=0 // pred_region
    _
  $region93: #{convnet_forward.1} parent=0 // pred_fallthru
    _
  // Predicated region
  $region94: #{convnet_forward.1} parent=0 // pred_check
    _
  $region95: #{convnet_forward.1} parent=0 // pred_check_branch
    %78 = sbr.rel (0) target = $region97
  $region96: #{convnet_forward.1} parent=0 // pred_region
    _
  $region97: #{convnet_forward.1} parent=0 // pred_fallthru
    _
  %v79 = vld [vmem:[%s0] sm:$0xff]
  %v80 = vld [vmem:[%s0 + $0x8] sm:$0xff]
  %v81 = vld [vmem:[%s0 + $0x10] sm:$0xff]
  %v82 = vld [vmem:[%s0 + $0x18] sm:$0xff]
  %v83 = vld [vmem:[%s0 + $0x20] sm:$0xff]
  %v84 = vld [vmem:[%s1] sm:$0xff]
  %v85 = vld [vmem:[%s1 + $0x8] sm:$0xff]
  %v86 = vld [vmem:[%s1 + $0x10] sm:$0xff]
  %v87 = vld [vmem:[%s1 + $0x18] sm:$0xff]
  %v88 = vld [vmem:[%s1 + $0x20] sm:$0xff]
  %vm89 = vcmask 326656
  %v91 = vsel %vm89, %v84, 0
  %v94 = vsel %vm89, %v85, 0
  %v97 = vsel %vm89, %v86, 0
  %v100 = vsel %vm89, %v87, 0
  %v103 = vsel %vm89, %v88, 0
  %105 = vmatpush.msra.mxu0 0.0
  %106 = vmatpush.msra.mxu0 0.0
  %107 = vmatpush.msra.mxu0 0.0
  %108 = vmatpush.msra.mxu0 0.0
  %109 = vmatpush.msra.mxu0 0.0
  %110 = vmatpush.msra.mxu0 0.0
  %111 = vmatpush.msra.mxu0 0.0
  %112 = vmatpush.msra.mxu0 0.0
  %113 = vmatpush.msra.mxu0 0.0
  %114 = vmatpush.msra.mxu0 0.0
  %115 = vmatpush.msra.mxu0 0.0
  %116 = vmatpush.msra.mxu0 %v83
  %117 = vmatpush.msra.mxu0 %v82
  %118 = vmatpush.msra.mxu0 %v81
  %119 = vmatpush.msra.mxu0 %v80
  %120 = vmatpush.msra.mxu0 %v79
  %121 = vmatmul.f32.gmra.mxu0 %v91
  %v122 = vpop.f32.mrf.mxu0
  %v123 = vadd.f32 0.0, %v122
  %124 = vmatmul.f32.gmra.mxu0 %v94
  %v125 = vpop.f32.mrf.mxu0
  %v126 = vadd.f32 0.0, %v125
  %127 = vmatmul.f32.gmra.mxu0 %v97
  %v128 = vpop.f32.mrf.mxu0
  %v129 = vadd.f32 0.0, %v128
  %130 = vmatmul.f32.gmra.mxu0 %v100
  %v131 = vpop.f32.mrf.mxu0
  %v132 = vadd.f32 0.0, %v131
  %133 = vmatmul.f32.gmra.mxu0 %v103
  %v134 = vpop.f32.mrf.mxu0
  %v135 = vadd.f32 0.0, %v134
  %136 = vdwg.mxu0
  %v137 = vld [vmem:[%s2] sm:$0xff]
  %v138 = vld [vmem:[%s2 + $0x8] sm:$0xf]
  %s139 = scalar_lea.vmem %s1, 40
  %v140 = vld [vmem:[%s139] sm:$0xff]
  %v141 = vld [vmem:[%s139 + $0x8] sm:$0xff]
  %v142 = vld [vmem:[%s139 + $0x10] sm:$0xff]
  %v143 = vld [vmem:[%s139 + $0x18] sm:$0xff]
  %v144 = vld [vmem:[%s139 + $0x20] sm:$0xff]
  %v146 = vsel %vm89, %v140, 0
  %v149 = vsel %vm89, %v141, 0
  %v152 = vsel %vm89, %v142, 0
  %v155 = vsel %vm89, %v143, 0
  %v158 = vsel %vm89, %v144, 0
  %160 = vmatpush.msra.mxu0 0.0
  %161 = vmatpush.msra.mxu0 0.0
  %162 = vmatpush.msra.mxu0 0.0
  %163 = vmatpush.msra.mxu0 0.0
  %164 = vmatpush.msra.mxu0 0.0
  %165 = vmatpush.msra.mxu0 0.0
  %166 = vmatpush.msra.mxu0 0.0
  %167 = vmatpush.msra.mxu0 0.0
  %168 = vmatpush.msra.mxu0 0.0
  %169 = vmatpush.msra.mxu0 0.0
  %170 = vmatpush.msra.mxu0 0.0
  %171 = vmatpush.msra.mxu0 %v83
  %172 = vmatpush.msra.mxu0 %v82
  %173 = vmatpush.msra.mxu0 %v81
  %174 = vmatpush.msra.mxu0 %v80
  %175 = vmatpush.msra.mxu0 %v79
  %176 = vmatmul.f32.gmra.mxu0 %v146
  %v177 = vpop.f32.mrf.mxu0
  %v178 = vadd.f32 0.0, %v177
  %179 = vmatmul.f32.gmra.mxu0 %v149
  %v180 = vpop.f32.mrf.mxu0
  %v181 = vadd.f32 0.0, %v180
  %182 = vmatmul.f32.gmra.mxu0 %v152
  %v183 = vpop.f32.mrf.mxu0
  %v184 = vadd.f32 0.0, %v183
  %185 = vmatmul.f32.gmra.mxu0 %v155
  %v186 = vpop.f32.mrf.mxu0
  %v187 = vadd.f32 0.0, %v186
  %188 = vmatmul.f32.gmra.mxu0 %v158
  %v189 = vpop.f32.mrf.mxu0
  %v190 = vadd.f32 0.0, %v189
  %191 = vdwg.mxu0
  %s192 = scalar_lea.vmem %s2, 16
  %v193 = vld [vmem:[%s192] sm:$0xff]
  %v194 = vld [vmem:[%s192 + $0x8] sm:$0xf]
  %vm195 = vcmask 97280
  %v197 = vsel %vm195, %v178, 0
  %v200 = vsel %vm195, %v181, 0
  %v203 = vsel %vm195, %v184, 0
  %v206 = vsel %vm195, %v187, 0
  %v209 = vsel %vm195, %v190, 0
  %vm211 = vcmask 1043456
  %v213 = vsel %vm211, %v194, 0
  %215 = vmatpush.msra.mxu0 0.0
  %216 = vmatpush.msra.mxu0 0.0
  %217 = vmatpush.msra.mxu0 0.0
  %218 = vmatpush.msra.mxu0 0.0
  %219 = vmatpush.msra.mxu0 0.0
  %220 = vmatpush.msra.mxu0 0.0
  %221 = vmatpush.msra.mxu0 0.0
  %222 = vmatpush.msra.mxu0 0.0
  %223 = vmatpush.msra.mxu0 0.0
  %224 = vmatpush.msra.mxu0 0.0
  %225 = vmatpush.msra.mxu0 0.0
  %226 = vmatpush.msra.mxu0 0.0
  %227 = vmatpush.msra.mxu0 0.0
  %228 = vmatpush.msra.mxu0 0.0
  %229 = vmatpush.msra.mxu0 %v213
  %230 = vmatpush.msra.mxu0 %v193
  %231 = vmatmul.f32.gmra.mxu0 %v197
  %v232 = vpop.f32.mrf.mxu0
  %v233 = vadd.f32 0.0, %v232
  %234 = vmatmul.f32.gmra.mxu0 %v200
  %v235 = vpop.f32.mrf.mxu0
  %v236 = vadd.f32 0.0, %v235
  %237 = vmatmul.f32.gmra.mxu0 %v203
  %v238 = vpop.f32.mrf.mxu0
  %v239 = vadd.f32 0.0, %v238
  %240 = vmatmul.f32.gmra.mxu0 %v206
  %v241 = vpop.f32.mrf.mxu0
  %v242 = vadd.f32 0.0, %v241
  %243 = vmatmul.f32.gmra.mxu0 %v209
  %v244 = vpop.f32.mrf.mxu0
  %v245 = vadd.f32 0.0, %v244
  %246 = vdwg.mxu0
  %v248 = vsel %vm195, %v123, 0
  %v251 = vsel %vm195, %v126, 0
  %v254 = vsel %vm195, %v129, 0
  %v257 = vsel %vm195, %v132, 0
  %v260 = vsel %vm195, %v135, 0
  %v263 = vsel %vm211, %v138, 0
  %265 = vmatpush.msra.mxu0 0.0
  %266 = vmatpush.msra.mxu0 0.0
  %267 = vmatpush.msra.mxu0 0.0
  %268 = vmatpush.msra.mxu0 0.0
  %269 = vmatpush.msra.mxu0 0.0
  %270 = vmatpush.msra.mxu0 0.0
  %271 = vmatpush.msra.mxu0 0.0
  %272 = vmatpush.msra.mxu0 0.0
  %273 = vmatpush.msra.mxu0 0.0
  %274 = vmatpush.msra.mxu0 0.0
  %275 = vmatpush.msra.mxu0 0.0
  %276 = vmatpush.msra.mxu0 0.0
  %277 = vmatpush.msra.mxu0 0.0
  %278 = vmatpush.msra.mxu0 0.0
  %279 = vmatpush.msra.mxu0 %v263
  %280 = vmatpush.msra.mxu0 %v137
  %281 = vmatmul.f32.gmra.mxu0 %v248
  %v282 = vpop.f32.mrf.mxu0
  %v283 = vadd.f32 %v233, %v282
  %284 = vmatmul.f32.gmra.mxu0 %v251
  %v285 = vpop.f32.mrf.mxu0
  %v286 = vadd.f32 %v236, %v285
  %287 = vmatmul.f32.gmra.mxu0 %v254
  %v288 = vpop.f32.mrf.mxu0
  %v289 = vadd.f32 %v239, %v288
  %290 = vmatmul.f32.gmra.mxu0 %v257
  %v291 = vpop.f32.mrf.mxu0
  %v292 = vadd.f32 %v242, %v291
  %293 = vmatmul.f32.gmra.mxu0 %v260
  %v294 = vpop.f32.mrf.mxu0
  %v295 = vadd.f32 %v245, %v294
  %296 = vdwg.mxu0
  %s297 = scalar_lea.vmem %s1, 80
  %v298 = vld [vmem:[%s297] sm:$0xff]
  %v299 = vld [vmem:[%s297 + $0x8] sm:$0xff]
  %v300 = vld [vmem:[%s297 + $0x10] sm:$0xff]
  %v301 = vld [vmem:[%s297 + $0x18] sm:$0xff]
  %v302 = vld [vmem:[%s297 + $0x20] sm:$0xff]
  %v304 = vsel %vm89, %v298, 0
  %v307 = vsel %vm89, %v299, 0
  %v310 = vsel %vm89, %v300, 0
  %v313 = vsel %vm89, %v301, 0
  %v316 = vsel %vm89, %v302, 0
  %318 = vmatpush.msra.mxu0 0.0
  %319 = vmatpush.msra.mxu0 0.0
  %320 = vmatpush.msra.mxu0 0.0
  %321 = vmatpush.msra.mxu0 0.0
  %322 = vmatpush.msra.mxu0 0.0
  %323 = vmatpush.msra.mxu0 0.0
  %324 = vmatpush.msra.mxu0 0.0
  %325 = vmatpush.msra.mxu0 0.0
  %326 = vmatpush.msra.mxu0 0.0
  %327 = vmatpush.msra.mxu0 0.0
  %328 = vmatpush.msra.mxu0 0.0
  %329 = vmatpush.msra.mxu0 %v83
  %330 = vmatpush.msra.mxu0 %v82
  %331 = vmatpush.msra.mxu0 %v81
  %332 = vmatpush.msra.mxu0 %v80
  %333 = vmatpush.msra.mxu0 %v79
  %334 = vmatmul.f32.gmra.mxu0 %v304
  %v335 = vpop.f32.mrf.mxu0
  %v336 = vadd.f32 0.0, %v335
  %337 = vmatmul.f32.gmra.mxu0 %v307
  %v338 = vpop.f32.mrf.mxu0
  %v339 = vadd.f32 0.0, %v338
  %340 = vmatmul.f32.gmra.mxu0 %v310
  %v341 = vpop.f32.mrf.mxu0
  %v342 = vadd.f32 0.0, %v341
  %343 = vmatmul.f32.gmra.mxu0 %v313
  %v344 = vpop.f32.mrf.mxu0
  %v345 = vadd.f32 0.0, %v344
  %346 = vmatmul.f32.gmra.mxu0 %v316
  %v347 = vpop.f32.mrf.mxu0
  %v348 = vadd.f32 0.0, %v347
  %349 = vdwg.mxu0
  %s350 = scalar_lea.vmem %s2, 32
  %v351 = vld [vmem:[%s350] sm:$0xff]
  %v352 = vld [vmem:[%s350 + $0x8] sm:$0xf]
  %v354 = vsel %vm195, %v336, 0
  %v357 = vsel %vm195, %v339, 0
  %v360 = vsel %vm195, %v342, 0
  %v363 = vsel %vm195, %v345, 0
  %v366 = vsel %vm195, %v348, 0
  %v369 = vsel %vm211, %v352, 0
  %371 = vmatpush.msra.mxu0 0.0
  %372 = vmatpush.msra.mxu0 0.0
  %373 = vmatpush.msra.mxu0 0.0
  %374 = vmatpush.msra.mxu0 0.0
  %375 = vmatpush.msra.mxu0 0.0
  %376 = vmatpush.msra.mxu0 0.0
  %377 = vmatpush.msra.mxu0 0.0
  %378 = vmatpush.msra.mxu0 0.0
  %379 = vmatpush.msra.mxu0 0.0
  %380 = vmatpush.msra.mxu0 0.0
  %381 = vmatpush.msra.mxu0 0.0
  %382 = vmatpush.msra.mxu0 0.0
  %383 = vmatpush.msra.mxu0 0.0
  %384 = vmatpush.msra.mxu0 0.0
  %385 = vmatpush.msra.mxu0 %v369
  %386 = vmatpush.msra.mxu0 %v351
  %387 = vmatmul.f32.gmra.mxu0 %v354
  %v388 = vpop.f32.mrf.mxu0
  %v389 = vadd.f32 0.0, %v388
  %390 = vmatmul.f32.gmra.mxu0 %v357
  %v391 = vpop.f32.mrf.mxu0
  %v392 = vadd.f32 0.0, %v391
  %393 = vmatmul.f32.gmra.mxu0 %v360
  %v394 = vpop.f32.mrf.mxu0
  %v395 = vadd.f32 0.0, %v394
  %396 = vmatmul.f32.gmra.mxu0 %v363
  %v397 = vpop.f32.mrf.mxu0
  %v398 = vadd.f32 0.0, %v397
  %399 = vmatmul.f32.gmra.mxu0 %v366
  %v400 = vpop.f32.mrf.mxu0
  %v401 = vadd.f32 0.0, %v400
  %402 = vdwg.mxu0
  %v403 = vadd.f32 %v283, %v389
  %v404 = vadd.f32 %v286, %v392
  %v405 = vadd.f32 %v289, %v395
  %v406 = vadd.f32 %v292, %v398
  %v407 = vadd.f32 %v295, %v401
  %s408 = scalar_lea.vmem %s1, 120
  %v409 = vld [vmem:[%s408] sm:$0xff]
  %v410 = vld [vmem:[%s408 + $0x8] sm:$0xff]
  %v411 = vld [vmem:[%s408 + $0x10] sm:$0xff]
  %v412 = vld [vmem:[%s408 + $0x18] sm:$0xff]
  %v413 = vld [vmem:[%s408 + $0x20] sm:$0xff]
  %v415 = vsel %vm89, %v409, 0
  %v418 = vsel %vm89, %v410, 0
  %v421 = vsel %vm89, %v411, 0
  %v424 = vsel %vm89, %v412, 0
  %v427 = vsel %vm89, %v413, 0
  %429 = vmatpush.msra.mxu0 0.0
  %430 = vmatpush.msra.mxu0 0.0
  %431 = vmatpush.msra.mxu0 0.0
  %432 = vmatpush.msra.mxu0 0.0
  %433 = vmatpush.msra.mxu0 0.0
  %434 = vmatpush.msra.mxu0 0.0
  %435 = vmatpush.msra.mxu0 0.0
  %436 = vmatpush.msra.mxu0 0.0
  %437 = vmatpush.msra.mxu0 0.0
  %438 = vmatpush.msra.mxu0 0.0
  %439 = vmatpush.msra.mxu0 0.0
  %440 = vmatpush.msra.mxu0 %v83
  %441 = vmatpush.msra.mxu0 %v82
  %442 = vmatpush.msra.mxu0 %v81
  %443 = vmatpush.msra.mxu0 %v80
  %444 = vmatpush.msra.mxu0 %v79
  %445 = vmatmul.f32.gmra.mxu0 %v415
  %v446 = vpop.f32.mrf.mxu0
  %v447 = vadd.f32 0.0, %v446
  %448 = vmatmul.f32.gmra.mxu0 %v418
  %v449 = vpop.f32.mrf.mxu0
  %v450 = vadd.f32 0.0, %v449
  %451 = vmatmul.f32.gmra.mxu0 %v421
  %v452 = vpop.f32.mrf.mxu0
  %v453 = vadd.f32 0.0, %v452
  %454 = vmatmul.f32.gmra.mxu0 %v424
  %v455 = vpop.f32.mrf.mxu0
  %v456 = vadd.f32 0.0, %v455
  %457 = vmatmul.f32.gmra.mxu0 %v427
  %v458 = vpop.f32.mrf.mxu0
  %v459 = vadd.f32 0.0, %v458
  %460 = vdwg.mxu0
  %s461 = scalar_lea.vmem %s2, 48
  %v462 = vld [vmem:[%s461] sm:$0xff]
  %v463 = vld [vmem:[%s461 + $0x8] sm:$0xf]
  %v465 = vsel %vm195, %v447, 0
  %v468 = vsel %vm195, %v450, 0
  %v471 = vsel %vm195, %v453, 0
  %v474 = vsel %vm195, %v456, 0
  %v477 = vsel %vm195, %v459, 0
  %v480 = vsel %vm211, %v463, 0
  %482 = vmatpush.msra.mxu0 0.0
  %483 = vmatpush.msra.mxu0 0.0
  %484 = vmatpush.msra.mxu0 0.0
  %485 = vmatpush.msra.mxu0 0.0
  %486 = vmatpush.msra.mxu0 0.0
  %487 = vmatpush.msra.mxu0 0.0
  %488 = vmatpush.msra.mxu0 0.0
  %489 = vmatpush.msra.mxu0 0.0
  %490 = vmatpush.msra.mxu0 0.0
  %491 = vmatpush.msra.mxu0 0.0
  %492 = vmatpush.msra.mxu0 0.0
  %493 = vmatpush.msra.mxu0 0.0
  %494 = vmatpush.msra.mxu0 0.0
  %495 = vmatpush.msra.mxu0 0.0
  %496 = vmatpush.msra.mxu0 %v480
  %497 = vmatpush.msra.mxu0 %v462
  %498 = vmatmul.f32.gmra.mxu0 %v465
  %v499 = vpop.f32.mrf.mxu0
  %v500 = vadd.f32 0.0, %v499
  %501 = vmatmul.f32.gmra.mxu0 %v468
  %v502 = vpop.f32.mrf.mxu0
  %v503 = vadd.f32 0.0, %v502
  %504 = vmatmul.f32.gmra.mxu0 %v471
  %v505 = vpop.f32.mrf.mxu0
  %v506 = vadd.f32 0.0, %v505
  %507 = vmatmul.f32.gmra.mxu0 %v474
  %v508 = vpop.f32.mrf.mxu0
  %v509 = vadd.f32 0.0, %v508
  %510 = vmatmul.f32.gmra.mxu0 %v477
  %v511 = vpop.f32.mrf.mxu0
  %v512 = vadd.f32 0.0, %v511
  %513 = vdwg.mxu0
  %v514 = vadd.f32 %v403, %v500
  %v515 = vadd.f32 %v404, %v503
  %v516 = vadd.f32 %v405, %v506
  %v517 = vadd.f32 %v406, %v509
  %v518 = vadd.f32 %v407, %v512
  %s519 = scalar_lea.vmem %s1, 160
  %v520 = vld [vmem:[%s519] sm:$0xff]
  %v521 = vld [vmem:[%s519 + $0x8] sm:$0xff]
  %v522 = vld [vmem:[%s519 + $0x10] sm:$0xff]
  %v523 = vld [vmem:[%s519 + $0x18] sm:$0xff]
  %v524 = vld [vmem:[%s519 + $0x20] sm:$0xff]
  %v526 = vsel %vm89, %v520, 0
  %v529 = vsel %vm89, %v521, 0
  %v532 = vsel %vm89, %v522, 0
  %v535 = vsel %vm89, %v523, 0
  %v538 = vsel %vm89, %v524, 0
  %540 = vmatpush.msra.mxu0 0.0
  %541 = vmatpush.msra.mxu0 0.0
  %542 = vmatpush.msra.mxu0 0.0
  %543 = vmatpush.msra.mxu0 0.0
  %544 = vmatpush.msra.mxu0 0.0
  %545 = vmatpush.msra.mxu0 0.0
  %546 = vmatpush.msra.mxu0 0.0
  %547 = vmatpush.msra.mxu0 0.0
  %548 = vmatpush.msra.mxu0 0.0
  %549 = vmatpush.msra.mxu0 0.0
  %550 = vmatpush.msra.mxu0 0.0
  %551 = vmatpush.msra.mxu0 %v83
  %552 = vmatpush.msra.mxu0 %v82
  %553 = vmatpush.msra.mxu0 %v81
  %554 = vmatpush.msra.mxu0 %v80
  %555 = vmatpush.msra.mxu0 %v79
  %556 = vmatmul.f32.gmra.mxu0 %v526
  %v557 = vpop.f32.mrf.mxu0
  %v558 = vadd.f32 0.0, %v557
  %559 = vmatmul.f32.gmra.mxu0 %v529
  %v560 = vpop.f32.mrf.mxu0
  %v561 = vadd.f32 0.0, %v560
  %562 = vmatmul.f32.gmra.mxu0 %v532
  %v563 = vpop.f32.mrf.mxu0
  %v564 = vadd.f32 0.0, %v563
  %565 = vmatmul.f32.gmra.mxu0 %v535
  %v566 = vpop.f32.mrf.mxu0
  %v567 = vadd.f32 0.0, %v566
  %568 = vmatmul.f32.gmra.mxu0 %v538
  %v569 = vpop.f32.mrf.mxu0
  %v570 = vadd.f32 0.0, %v569
  %571 = vdwg.mxu0
  %s572 = scalar_lea.vmem %s2, 64
  %v573 = vld [vmem:[%s572] sm:$0xff]
  %v574 = vld [vmem:[%s572 + $0x8] sm:$0xf]
  %v576 = vsel %vm195, %v558, 0
  %v579 = vsel %vm195, %v561, 0
  %v582 = vsel %vm195, %v564, 0
  %v585 = vsel %vm195, %v567, 0
  %v588 = vsel %vm195, %v570, 0
  %v591 = vsel %vm211, %v574, 0
  %593 = vmatpush.msra.mxu0 0.0
  %594 = vmatpush.msra.mxu0 0.0
  %595 = vmatpush.msra.mxu0 0.0
  %596 = vmatpush.msra.mxu0 0.0
  %597 = vmatpush.msra.mxu0 0.0
  %598 = vmatpush.msra.mxu0 0.0
  %599 = vmatpush.msra.mxu0 0.0
  %600 = vmatpush.msra.mxu0 0.0
  %601 = vmatpush.msra.mxu0 0.0
  %602 = vmatpush.msra.mxu0 0.0
  %603 = vmatpush.msra.mxu0 0.0
  %604 = vmatpush.msra.mxu0 0.0
  %605 = vmatpush.msra.mxu0 0.0
  %606 = vmatpush.msra.mxu0 0.0
  %607 = vmatpush.msra.mxu0 %v591
  %608 = vmatpush.msra.mxu0 %v573
  %609 = vmatmul.f32.gmra.mxu0 %v576
  %v610 = vpop.f32.mrf.mxu0
  %v611 = vadd.f32 0.0, %v610
  %612 = vmatmul.f32.gmra.mxu0 %v579
  %v613 = vpop.f32.mrf.mxu0
  %v614 = vadd.f32 0.0, %v613
  %615 = vmatmul.f32.gmra.mxu0 %v582
  %v616 = vpop.f32.mrf.mxu0
  %v617 = vadd.f32 0.0, %v616
  %618 = vmatmul.f32.gmra.mxu0 %v585
  %v619 = vpop.f32.mrf.mxu0
  %v620 = vadd.f32 0.0, %v619
  %621 = vmatmul.f32.gmra.mxu0 %v588
  %v622 = vpop.f32.mrf.mxu0
  %v623 = vadd.f32 0.0, %v622
  %624 = vdwg.mxu0
  %v625 = vadd.f32 %v514, %v611
  %v626 = vadd.f32 %v515, %v614
  %v627 = vadd.f32 %v516, %v617
  %v628 = vadd.f32 %v517, %v620
  %v629 = vadd.f32 %v518, %v623
  %v630 = vld [vmem:[%s3] sm:$0xff]
  %v631 = vld [vmem:[%s3 + $0x8] sm:$0xff]
  %v632 = vld [vmem:[%s3 + $0x10] sm:$0xff]
  %v633 = vld [vmem:[%s3 + $0x18] sm:$0xff]
  %v634 = vld [vmem:[%s3 + $0x20] sm:$0xff]
  %v635 = vld [vmem:[%s3 + $0x28] sm:$0xff]
  %v636 = vld [vmem:[%s3 + $0x30] sm:$0xff]
  %v637 = vld [vmem:[%s3 + $0x38] sm:$0xff]
  %v638 = vld [vmem:[%s3 + $0x40] sm:$0xff]
  %v639 = vld [vmem:[%s3 + $0x48] sm:$0xff]
  %v640 = vld [vmem:[%s3 + $0x50] sm:$0xff]
  %v641 = vld [vmem:[%s3 + $0x58] sm:$0xff]
  %vm642 = vcmask 785408
  %v644 = vsel %vm642, %v625, 0
  %v647 = vsel %vm642, %v626, 0
  %v650 = vsel %vm642, %v627, 0
  %v653 = vsel %vm642, %v628, 0
  %v656 = vsel %vm642, %v629, 0
  %658 = vmatpush.msra.mxu0 0.0
  %659 = vmatpush.msra.mxu0 0.0
  %660 = vmatpush.msra.mxu0 0.0
  %661 = vmatpush.msra.mxu0 0.0
  %662 = vmatpush.msra.mxu0 %v641
  %663 = vmatpush.msra.mxu0 %v640
  %664 = vmatpush.msra.mxu0 %v639
  %665 = vmatpush.msra.mxu0 %v638
  %666 = vmatpush.msra.mxu0 %v637
  %667 = vmatpush.msra.mxu0 %v636
  %668 = vmatpush.msra.mxu0 %v635
  %669 = vmatpush.msra.mxu0 %v634
  %670 = vmatpush.msra.mxu0 %v633
  %671 = vmatpush.msra.mxu0 %v632
  %672 = vmatpush.msra.mxu0 %v631
  %673 = vmatpush.msra.mxu0 %v630
  %674 = vmatmul.f32.gmra.mxu0 %v644
  %v675 = vpop.f32.mrf.mxu0
  %v676 = vadd.f32 0.0, %v675
  %677 = vmatmul.f32.gmra.mxu0 %v647
  %v678 = vpop.f32.mrf.mxu0
  %v679 = vadd.f32 0.0, %v678
  %680 = vmatmul.f32.gmra.mxu0 %v650
  %v681 = vpop.f32.mrf.mxu0
  %v682 = vadd.f32 0.0, %v681
  %683 = vmatmul.f32.gmra.mxu0 %v653
  %v684 = vpop.f32.mrf.mxu0
  %v685 = vadd.f32 0.0, %v684
  %686 = vmatmul.f32.gmra.mxu0 %v656
  %v687 = vpop.f32.mrf.mxu0
  %v688 = vadd.f32 0.0, %v687
  %689 = vdwg.mxu0
  %vm690 = vcmask 64512
  %v691 = vsel %vm690, %v676, 0.0
  %v692 = vsel %vm690, %v679, 0.0
  %v693 = vadd.f32 %v691, %v692
  %v694 = vsel %vm690, %v682, 0.0
  %v695 = vadd.f32 %v693, %v694
  %v696 = vsel %vm690, %v685, 0.0
  %v697 = vadd.f32 %v695, %v696
  %v698 = vsel %vm690, %v688, 0.0
  %v699 = vadd.f32 %v697, %v698
  %v700 = vrot.slane %v699, 4
  %v701 = vadd.f32 %v699, %v700
  %v702 = vrot.slane %v701, 2
  %v703 = vadd.f32 %v701, %v702
  %v704 = vrot.slane %v703, 1
  %v705 = vadd.f32 %v703, %v704
  %v706 = vmul.f32 %v625, %v625
  %v707 = vmul.f32 %v626, %v626
  %v708 = vmul.f32 %v627, %v627
  %v709 = vmul.f32 %v628, %v628
  %v710 = vmul.f32 %v629, %v629
  %v712 = vsel %vm642, %v706, 0
  %v715 = vsel %vm642, %v707, 0
  %v718 = vsel %vm642, %v708, 0
  %v721 = vsel %vm642, %v709, 0
  %v724 = vsel %vm642, %v710, 0
  %726 = vmatpush.msra.mxu0 0.0
  %727 = vmatpush.msra.mxu0 0.0
  %728 = vmatpush.msra.mxu0 0.0
  %729 = vmatpush.msra.mxu0 0.0
  %730 = vmatpush.msra.mxu0 %v641
  %731 = vmatpush.msra.mxu0 %v640
  %732 = vmatpush.msra.mxu0 %v639
  %733 = vmatpush.msra.mxu0 %v638
  %734 = vmatpush.msra.mxu0 %v637
  %735 = vmatpush.msra.mxu0 %v636
  %736 = vmatpush.msra.mxu0 %v635
  %737 = vmatpush.msra.mxu0 %v634
  %738 = vmatpush.msra.mxu0 %v633
  %739 = vmatpush.msra.mxu0 %v632
  %740 = vmatpush.msra.mxu0 %v631
  %741 = vmatpush.msra.mxu0 %v630
  %742 = vmatmul.f32.gmra.mxu0 %v712
  %v743 = vpop.f32.mrf.mxu0
  %v744 = vadd.f32 0.0, %v743
  %745 = vmatmul.f32.gmra.mxu0 %v715
  %v746 = vpop.f32.mrf.mxu0
  %v747 = vadd.f32 0.0, %v746
  %748 = vmatmul.f32.gmra.mxu0 %v718
  %v749 = vpop.f32.mrf.mxu0
  %v750 = vadd.f32 0.0, %v749
  %751 = vmatmul.f32.gmra.mxu0 %v721
  %v752 = vpop.f32.mrf.mxu0
  %v753 = vadd.f32 0.0, %v752
  %754 = vmatmul.f32.gmra.mxu0 %v724
  %v755 = vpop.f32.mrf.mxu0
  %v756 = vadd.f32 0.0, %v755
  %757 = vdwg.mxu0
  %v758 = vsel %vm690, %v744, 0.0
  %v759 = vsel %vm690, %v747, 0.0
  %v760 = vadd.f32 %v758, %v759
  %v761 = vsel %vm690, %v750, 0.0
  %v762 = vadd.f32 %v760, %v761
  %v763 = vsel %vm690, %v753, 0.0
  %v764 = vadd.f32 %v762, %v763
  %v765 = vsel %vm690, %v756, 0.0
  %v766 = vadd.f32 %v764, %v765
  %v767 = vrot.slane %v766, 4
  %v768 = vadd.f32 %v766, %v767
  %v769 = vrot.slane %v768, 2
  %v770 = vadd.f32 %v768, %v769
  %v771 = vrot.slane %v770, 1
  %v772 = vadd.f32 %v770, %v771
  %v773 = vrcp.pop 480.0
  %v774 = vmul.f32 480.0, %v773
  %v775 = vsub.f32 1.0, %v774
  %v776 = vmul.f32 %v773, %v775
  %v777 = vadd.f32 %v773, %v776
  %vm778 = vweird.f32 %v773
  %v779 = vsel %vm778, %v773, %v777
  %v780 = vmul.f32 %v705, %v779
  %v781 = vmul.f32 %v772, %v779
  %v782 = vmul.f32 %v780, %v780
  %v783 = vsub.f32 %v781, %v782
  %v784 = vld [vmem:[%s5] sm:$0x1]
  %v785 = vadd.f32 %v783, 1e-05
  %v786 = vrsqrt.pop %v785
  %v787 = vmul.f32 %v786, %v785
  %v788 = vmul.f32 %v787, %v786
  %v789 = vmul.f32 0.5, %v788
  %v790 = vsub.f32 1.5, %v789
  %v791 = vmul.f32 %v786, %v790
  %vm792 = vweird.f32 %v785
  %vm793 = vweird.f32 %v786
  %vm794 = vmor %vm792, %vm793
  %v795 = vsel %vm794, %v786, %v791
  %v796 = vmul.f32 %v784, %v795
  %v797 = vld [vmem:[%s6] sm:$0x1]
  %v798 = vmul.f32 %v780, %v796
  %v799 = vsub.f32 %v797, %v798
  %v800 = vld [vmem:[%s4] sm:$0xff]
  %v802 = vsel %vm690, %v796, 0
  %804 = vmatpush.msra.mxu0 0.0
  %805 = vmatpush.msra.mxu0 0.0
  %806 = vmatpush.msra.mxu0 0.0
  %807 = vmatpush.msra.mxu0 0.0
  %808 = vmatpush.msra.mxu0 0.0
  %809 = vmatpush.msra.mxu0 0.0
  %810 = vmatpush.msra.mxu0 0.0
  %811 = vmatpush.msra.mxu0 0.0
  %812 = vmatpush.msra.mxu0 0.0
  %813 = vmatpush.msra.mxu0 0.0
  %814 = vmatpush.msra.mxu0 0.0
  %815 = vmatpush.msra.mxu0 0.0
  %816 = vmatpush.msra.mxu0 0.0
  %817 = vmatpush.msra.mxu0 0.0
  %818 = vmatpush.msra.mxu0 0.0
  %819 = vmatpush.msra.mxu0 %v800
  %820 = vmatmul.f32.gmra.mxu0 %v802
  %v821 = vpop.f32.mrf.mxu0
  %v822 = vadd.f32 0.0, %v821
  %823 = vdwg.mxu0
  %v825 = vsel %vm690, %v799, 0
  %827 = vmatpush.msra.mxu0 0.0
  %828 = vmatpush.msra.mxu0 0.0
  %829 = vmatpush.msra.mxu0 0.0
  %830 = vmatpush.msra.mxu0 0.0
  %831 = vmatpush.msra.mxu0 0.0
  %832 = vmatpush.msra.mxu0 0.0
  %833 = vmatpush.msra.mxu0 0.0
  %834 = vmatpush.msra.mxu0 0.0
  %835 = vmatpush.msra.mxu0 0.0
  %836 = vmatpush.msra.mxu0 0.0
  %837 = vmatpush.msra.mxu0 0.0
  %838 = vmatpush.msra.mxu0 0.0
  %839 = vmatpush.msra.mxu0 0.0
  %840 = vmatpush.msra.mxu0 0.0
  %841 = vmatpush.msra.mxu0 0.0
  %842 = vmatpush.msra.mxu0 %v800
  %843 = vmatmul.f32.gmra.mxu0 %v825
  %v844 = vpop.f32.mrf.mxu0
  %v845 = vadd.f32 0.0, %v844
  %846 = vdwg.mxu0
  %v847 = vperm.slane %v822, 0
  %v848 = vmul.f32 %v625, %v847
  %v849 = vmul.f32 %v626, %v847
  %v850 = vmul.f32 %v627, %v847
  %v851 = vmul.f32 %v628, %v847
  %v852 = vmul.f32 %v629, %v847
  %v853 = vperm.slane %v845, 0
  %v854 = vadd.f32 %v848, %v853
  %v855 = vadd.f32 %v849, %v853
  %v856 = vadd.f32 %v850, %v853
  %v857 = vadd.f32 %v851, %v853
  %v858 = vadd.f32 %v852, %v853
  %v859 = vmax.f32 %v854, 0.0
  %v860 = vmax.f32 %v855, 0.0
  %v861 = vmax.f32 %v856, 0.0
  %v862 = vmax.f32 %v857, 0.0
  %v863 = vmax.f32 %v858, 0.0
  %v864 = vld [vmem:[%s7] sm:$0xff]
  %v865 = vld [vmem:[%s7 + $0x8] sm:$0xff]
  %v866 = vld [vmem:[%s7 + $0x10] sm:$0xf]
  %v868 = vsel %vm89, %v864, 0
  %v871 = vsel %vm89, %v865, 0
  %v874 = vsel %vm89, %v866, 0
  %876 = vmatpush.msra.mxu0 0.0
  %877 = vmatpush.msra.mxu0 0.0
  %878 = vmatpush.msra.mxu0 0.0
  %879 = vmatpush.msra.mxu0 0.0
  %880 = vmatpush.msra.mxu0 0.0
  %881 = vmatpush.msra.mxu0 0.0
  %882 = vmatpush.msra.mxu0 0.0
  %883 = vmatpush.msra.mxu0 0.0
  %884 = vmatpush.msra.mxu0 0.0
  %885 = vmatpush.msra.mxu0 0.0
  %886 = vmatpush.msra.mxu0 0.0
  %887 = vmatpush.msra.mxu0 %v863
  %888 = vmatpush.msra.mxu0 %v862
  %889 = vmatpush.msra.mxu0 %v861
  %890 = vmatpush.msra.mxu0 %v860
  %891 = vmatpush.msra.mxu0 %v859
  %892 = vmatmul.f32.gmra.mxu0 %v868
  %v893 = vpop.f32.mrf.mxu0
  %v894 = vadd.f32 0.0, %v893
  %895 = vmatmul.f32.gmra.mxu0 %v871
  %v896 = vpop.f32.mrf.mxu0
  %v897 = vadd.f32 0.0, %v896
  %898 = vmatmul.f32.gmra.mxu0 %v874
  %v899 = vpop.f32.mrf.mxu0
  %v900 = vadd.f32 0.0, %v899
  %901 = vdwg.mxu0
  %s902 = scalar_lea.vmem %s7, 24
  %v903 = vld [vmem:[%s902] sm:$0xff]
  %v904 = vld [vmem:[%s902 + $0x8] sm:$0xff]
  %v905 = vld [vmem:[%s902 + $0x10] sm:$0xf]
  %v907 = vsel %vm89, %v903, 0
  %v910 = vsel %vm89, %v904, 0
  %v913 = vsel %vm89, %v905, 0
  %915 = vmatpush.msra.mxu0 0.0
  %916 = vmatpush.msra.mxu0 0.0
  %917 = vmatpush.msra.mxu0 0.0
  %918 = vmatpush.msra.mxu0 0.0
  %919 = vmatpush.msra.mxu0 0.0
  %920 = vmatpush.msra.mxu0 0.0
  %921 = vmatpush.msra.mxu0 0.0
  %922 = vmatpush.msra.mxu0 0.0
  %923 = vmatpush.msra.mxu0 0.0
  %924 = vmatpush.msra.mxu0 0.0
  %925 = vmatpush.msra.mxu0 0.0
  %926 = vmatpush.msra.mxu0 %v863
  %927 = vmatpush.msra.mxu0 %v862
  %928 = vmatpush.msra.mxu0 %v861
  %929 = vmatpush.msra.mxu0 %v860
  %930 = vmatpush.msra.mxu0 %v859
  %931 = vmatmul.f32.gmra.mxu0 %v907
  %v932 = vpop.f32.mrf.mxu0
  %v933 = vadd.f32 0.0, %v932
  %934 = vmatmul.f32.gmra.mxu0 %v910
  %v935 = vpop.f32.mrf.mxu0
  %v936 = vadd.f32 0.0, %v935
  %937 = vmatmul.f32.gmra.mxu0 %v913
  %v938 = vpop.f32.mrf.mxu0
  %v939 = vadd.f32 0.0, %v938
  %940 = vdwg.mxu0
  %v941 = vmax.f32 %v894, %v933
  %v942 = vmax.f32 %v897, %v936
  %v943 = vmax.f32 %v900, %v939
  %v944 = vld [vmem:[%s8] sm:$0xff]
  %v945 = vld [vmem:[%s8 + $0x8] sm:$0xff]
  %v946 = vld [vmem:[%s8 + $0x10] sm:$0xff]
  %v947 = vld [vmem:[%s8 + $0x18] sm:$0xff]
  %v948 = vld [vmem:[%s8 + $0x20] sm:$0xff]
  %v949 = vld [vmem:[%s8 + $0x28] sm:$0xff]
  %v950 = vld [vmem:[%s8 + $0x30] sm:$0xff]
  %v951 = vld [vmem:[%s8 + $0x38] sm:$0xff]
  %v952 = vld [vmem:[%s8 + $0x40] sm:$0xff]
  %v953 = vld [vmem:[%s8 + $0x48] sm:$0xff]
  %v954 = vld [vmem:[%s8 + $0x50] sm:$0xff]
  %v955 = vld [vmem:[%s8 + $0x58] sm:$0xff]
  %v957 = vsel %vm642, %v941, 0
  %v960 = vsel %vm642, %v942, 0
  %v963 = vsel %vm642, %v943, 0
  %965 = vmatpush.msra.mxu0 0.0
  %966 = vmatpush.msra.mxu0 0.0
  %967 = vmatpush.msra.mxu0 0.0
  %968 = vmatpush.msra.mxu0 0.0
  %969 = vmatpush.msra.mxu0 %v955
  %970 = vmatpush.msra.mxu0 %v954
  %971 = vmatpush.msra.mxu0 %v953
  %972 = vmatpush.msra.mxu0 %v952
  %973 = vmatpush.msra.mxu0 %v951
  %974 = vmatpush.msra.mxu0 %v950
  %975 = vmatpush.msra.mxu0 %v949
  %976 = vmatpush.msra.mxu0 %v948
  %977 = vmatpush.msra.mxu0 %v947
  %978 = vmatpush.msra.mxu0 %v946
  %979 = vmatpush.msra.mxu0 %v945
  %980 = vmatpush.msra.mxu0 %v944
  %981 = vmatmul.f32.gmra.mxu0 %v957
  %v982 = vpop.f32.mrf.mxu0
  %v983 = vadd.f32 0.0, %v982
  %984 = vmatmul.f32.gmra.mxu0 %v960
  %v985 = vpop.f32.mrf.mxu0
  %v986 = vadd.f32 0.0, %v985
  %987 = vmatmul.f32.gmra.mxu0 %v963
  %v988 = vpop.f32.mrf.mxu0
  %v989 = vadd.f32 0.0, %v988
  %990 = vdwg.mxu0
  %s991 = scalar_lea.vmem %s8, 96
  %v992 = vld [vmem:[%s991] sm:$0xff]
  %v993 = vld [vmem:[%s991 + $0x8] sm:$0xff]
  %v994 = vld [vmem:[%s991 + $0x10] sm:$0xff]
  %v995 = vld [vmem:[%s991 + $0x18] sm:$0xff]
  %v996 = vld [vmem:[%s991 + $0x20] sm:$0xff]
  %v997 = vld [vmem:[%s991 + $0x28] sm:$0xff]
  %v998 = vld [vmem:[%s991 + $0x30] sm:$0xff]
  %v999 = vld [vmem:[%s991 + $0x38] sm:$0xff]
  %v1000 = vld [vmem:[%s991 + $0x40] sm:$0xff]
  %v1001 = vld [vmem:[%s991 + $0x48] sm:$0xff]
  %v1002 = vld [vmem:[%s991 + $0x50] sm:$0xff]
  %v1003 = vld [vmem:[%s991 + $0x58] sm:$0xff]
  %1004 = vmatpush.msra.mxu0 0.0
  %1005 = vmatpush.msra.mxu0 0.0
  %1006 = vmatpush.msra.mxu0 0.0
  %1007 = vmatpush.msra.mxu0 0.0
  %1008 = vmatpush.msra.mxu0 %v1003
  %1009 = vmatpush.msra.mxu0 %v1002
  %1010 = vmatpush.msra.mxu0 %v1001
  %1011 = vmatpush.msra.mxu0 %v1000
  %1012 = vmatpush.msra.mxu0 %v999
  %1013 = vmatpush.msra.mxu0 %v998
  %1014 = vmatpush.msra.mxu0 %v997
  %1015 = vmatpush.msra.mxu0 %v996
  %1016 = vmatpush.msra.mxu0 %v995
  %1017 = vmatpush.msra.mxu0 %v994
  %1018 = vmatpush.msra.mxu0 %v993
  %1019 = vmatpush.msra.mxu0 %v992
  %1020 = vmatmul.f32.gmra.mxu0 %v957
  %v1021 = vpop.f32.mrf.mxu0
  %v1022 = vadd.f32 0.0, %v1021
  %1023 = vmatmul.f32.gmra.mxu0 %v960
  %v1024 = vpop.f32.mrf.mxu0
  %v1025 = vadd.f32 0.0, %v1024
  %1026 = vmatmul.f32.gmra.mxu0 %v963
  %v1027 = vpop.f32.mrf.mxu0
  %v1028 = vadd.f32 0.0, %v1027
  %1029 = vdwg.mxu0
  %v1030 = vmax.f32 %v983, %v1022
  %v1031 = vmax.f32 %v986, %v1025
  %v1032 = vmax.f32 %v989, %v1028
  %v1033 = vld [vmem:[%s9] sm:$0xff]
  %v1034 = vld [vmem:[%s9 + $0x8] sm:$0xff]
  %v1035 = vld [vmem:[%s9 + $0x10] sm:$0xf]
  %vm1036 = vcmask 162816
  %v1038 = vsel %vm1036, %v1033, 0
  %v1041 = vsel %vm1036, %v1034, 0
  %v1044 = vsel %vm1036, %v1035, 0
  %v1047 = vsel %vm211, %v1032, 0
  %1049 = vmatpush.msra.mxu0 0.0
  %1050 = vmatpush.msra.mxu0 0.0
  %1051 = vmatpush.msra.mxu0 0.0
  %1052 = vmatpush.msra.mxu0 0.0
  %1053 = vmatpush.msra.mxu0 0.0
  %1054 = vmatpush.msra.mxu0 0.0
  %1055 = vmatpush.msra.mxu0 0.0
  %1056 = vmatpush.msra.mxu0 0.0
  %1057 = vmatpush.msra.mxu0 0.0
  %1058 = vmatpush.msra.mxu0 0.0
  %1059 = vmatpush.msra.mxu0 0.0
  %1060 = vmatpush.msra.mxu0 0.0
  %1061 = vmatpush.msra.mxu0 0.0
  %1062 = vmatpush.msra.mxu0 %v1047
  %1063 = vmatpush.msra.mxu0 %v1031
  %1064 = vmatpush.msra.mxu0 %v1030
  %1065 = vmatmul.f32.gmra.mxu0 %v1038
  %v1066 = vpop.f32.mrf.mxu0
  %v1067 = vadd.f32 0.0, %v1066
  %1068 = vmatmul.f32.gmra.mxu0 %v1041
  %v1069 = vpop.f32.mrf.mxu0
  %v1070 = vadd.f32 0.0, %v1069
  %1071 = vmatmul.f32.gmra.mxu0 %v1044
  %v1072 = vpop.f32.mrf.mxu0
  %v1073 = vadd.f32 0.0, %v1072
  %1074 = vdwg.mxu0
  %v1075 = vld [vmem:[%s10] sm:$0xff]
  %v1076 = vld [vmem:[%s10 + $0x8] sm:$0xff]
  %v1077 = vld [vmem:[%s10 + $0x10] sm:$0xff]
  %v1078 = vld [vmem:[%s10 + $0x18] sm:$0xff]
  %v1079 = vld [vmem:[%s10 + $0x20] sm:$0xff]
  %v1080 = vld [vmem:[%s10 + $0x28] sm:$0xff]
  %s1081 = scalar_lea.vmem %s9, 24
  %v1082 = vld [vmem:[%s1081] sm:$0xff]
  %v1083 = vld [vmem:[%s1081 + $0x8] sm:$0xff]
  %v1084 = vld [vmem:[%s1081 + $0x10] sm:$0xf]
  %v1086 = vsel %vm1036, %v1082, 0
  %v1089 = vsel %vm1036, %v1083, 0
  %v1092 = vsel %vm1036, %v1084, 0
  %1094 = vmatpush.msra.mxu0 0.0
  %1095 = vmatpush.msra.mxu0 0.0
  %1096 = vmatpush.msra.mxu0 0.0
  %1097 = vmatpush.msra.mxu0 0.0
  %1098 = vmatpush.msra.mxu0 0.0
  %1099 = vmatpush.msra.mxu0 0.0
  %1100 = vmatpush.msra.mxu0 0.0
  %1101 = vmatpush.msra.mxu0 0.0
  %1102 = vmatpush.msra.mxu0 0.0
  %1103 = vmatpush.msra.mxu0 0.0
  %1104 = vmatpush.msra.mxu0 0.0
  %1105 = vmatpush.msra.mxu0 0.0
  %1106 = vmatpush.msra.mxu0 0.0
  %1107 = vmatpush.msra.mxu0 %v1047
  %1108 = vmatpush.msra.mxu0 %v1031
  %1109 = vmatpush.msra.mxu0 %v1030
  %1110 = vmatmul.f32.gmra.mxu0 %v1086
  %v1111 = vpop.f32.mrf.mxu0
  %v1112 = vadd.f32 0.0, %v1111
  %1113 = vmatmul.f32.gmra.mxu0 %v1089
  %v1114 = vpop.f32.mrf.mxu0
  %v1115 = vadd.f32 0.0, %v1114
  %1116 = vmatmul.f32.gmra.mxu0 %v1092
  %v1117 = vpop.f32.mrf.mxu0
  %v1118 = vadd.f32 0.0, %v1117
  %1119 = vdwg.mxu0
  %s1120 = scalar_lea.vmem %s10, 48
  %v1121 = vld [vmem:[%s1120] sm:$0xff]
  %v1122 = vld [vmem:[%s1120 + $0x8] sm:$0xff]
  %v1123 = vld [vmem:[%s1120 + $0x10] sm:$0xff]
  %v1124 = vld [vmem:[%s1120 + $0x18] sm:$0xff]
  %v1125 = vld [vmem:[%s1120 + $0x20] sm:$0xff]
  %v1126 = vld [vmem:[%s1120 + $0x28] sm:$0xff]
  %vm1127 = vcmask 392192
  %v1129 = vsel %vm1127, %v1112, 0
  %v1132 = vsel %vm1127, %v1115, 0
  %v1135 = vsel %vm1127, %v1118, 0
  %1137 = vmatpush.msra.mxu0 0.0
  %1138 = vmatpush.msra.mxu0 0.0
  %1139 = vmatpush.msra.mxu0 0.0
  %1140 = vmatpush.msra.mxu0 0.0
  %1141 = vmatpush.msra.mxu0 0.0
  %1142 = vmatpush.msra.mxu0 0.0
  %1143 = vmatpush.msra.mxu0 0.0
  %1144 = vmatpush.msra.mxu0 0.0
  %1145 = vmatpush.msra.mxu0 0.0
  %1146 = vmatpush.msra.mxu0 0.0
  %1147 = vmatpush.msra.mxu0 %v1126
  %1148 = vmatpush.msra.mxu0 %v1125
  %1149 = vmatpush.msra.mxu0 %v1124
  %1150 = vmatpush.msra.mxu0 %v1123
  %1151 = vmatpush.msra.mxu0 %v1122
  %1152 = vmatpush.msra.mxu0 %v1121
  %1153 = vmatmul.f32.gmra.mxu0 %v1129
  %v1154 = vpop.f32.mrf.mxu0
  %v1155 = vadd.f32 0.0, %v1154
  %1156 = vmatmul.f32.gmra.mxu0 %v1132
  %v1157 = vpop.f32.mrf.mxu0
  %v1158 = vadd.f32 0.0, %v1157
  %1159 = vmatmul.f32.gmra.mxu0 %v1135
  %v1160 = vpop.f32.mrf.mxu0
  %v1161 = vadd.f32 0.0, %v1160
  %1162 = vdwg.mxu0
  %v1164 = vsel %vm1127, %v1067, 0
  %v1167 = vsel %vm1127, %v1070, 0
  %v1170 = vsel %vm1127, %v1073, 0
  %1172 = vmatpush.msra.mxu0 0.0
  %1173 = vmatpush.msra.mxu0 0.0
  %1174 = vmatpush.msra.mxu0 0.0
  %1175 = vmatpush.msra.mxu0 0.0
  %1176 = vmatpush.msra.mxu0 0.0
  %1177 = vmatpush.msra.mxu0 0.0
  %1178 = vmatpush.msra.mxu0 0.0
  %1179 = vmatpush.msra.mxu0 0.0
  %1180 = vmatpush.msra.mxu0 0.0
  %1181 = vmatpush.msra.mxu0 0.0
  %1182 = vmatpush.msra.mxu0 %v1080
  %1183 = vmatpush.msra.mxu0 %v1079
  %1184 = vmatpush.msra.mxu0 %v1078
  %1185 = vmatpush.msra.mxu0 %v1077
  %1186 = vmatpush.msra.mxu0 %v1076
  %1187 = vmatpush.msra.mxu0 %v1075
  %1188 = vmatmul.f32.gmra.mxu0 %v1164
  %v1189 = vpop.f32.mrf.mxu0
  %v1190 = vadd.f32 %v1155, %v1189
  %1191 = vmatmul.f32.gmra.mxu0 %v1167
  %v1192 = vpop.f32.mrf.mxu0
  %v1193 = vadd.f32 %v1158, %v1192
  %1194 = vmatmul.f32.gmra.mxu0 %v1170
  %v1195 = vpop.f32.mrf.mxu0
  %v1196 = vadd.f32 %v1161, %v1195
  %1197 = vdwg.mxu0
  %s1198 = scalar_lea.vmem %s9, 48
  %v1199 = vld [vmem:[%s1198] sm:$0xff]
  %v1200 = vld [vmem:[%s1198 + $0x8] sm:$0xff]
  %v1201 = vld [vmem:[%s1198 + $0x10] sm:$0xf]
  %v1203 = vsel %vm1036, %v1199, 0
  %v1206 = vsel %vm1036, %v1200, 0
  %v1209 = vsel %vm1036, %v1201, 0
  %1211 = vmatpush.msra.mxu0 0.0
  %1212 = vmatpush.msra.mxu0 0.0
  %1213 = vmatpush.msra.mxu0 0.0
  %1214 = vmatpush.msra.mxu0 0.0
  %1215 = vmatpush.msra.mxu0 0.0
  %1216 = vmatpush.msra.mxu0 0.0
  %1217 = vmatpush.msra.mxu0 0.0
  %1218 = vmatpush.msra.mxu0 0.0
  %1219 = vmatpush.msra.mxu0 0.0
  %1220 = vmatpush.msra.mxu0 0.0
  %1221 = vmatpush.msra.mxu0 0.0
  %1222 = vmatpush.msra.mxu0 0.0
  %1223 = vmatpush.msra.mxu0 0.0
  %1224 = vmatpush.msra.mxu0 %v1047
  %1225 = vmatpush.msra.mxu0 %v1031
  %1226 = vmatpush.msra.mxu0 %v1030
  %1227 = vmatmul.f32.gmra.mxu0 %v1203
  %v1228 = vpop.f32.mrf.mxu0
  %v1229 = vadd.f32 0.0, %v1228
  %1230 = vmatmul.f32.gmra.mxu0 %v1206
  %v1231 = vpop.f32.mrf.mxu0
  %v1232 = vadd.f32 0.0, %v1231
  %1233 = vmatmul.f32.gmra.mxu0 %v1209
  %v1234 = vpop.f32.mrf.mxu0
  %v1235 = vadd.f32 0.0, %v1234
  %1236 = vdwg.mxu0
  %s1237 = scalar_lea.vmem %s10, 96
  %v1238 = vld [vmem:[%s1237] sm:$0xff]
  %v1239 = vld [vmem:[%s1237 + $0x8] sm:$0xff]
  %v1240 = vld [vmem:[%s1237 + $0x10] sm:$0xff]
  %v1241 = vld [vmem:[%s1237 + $0x18] sm:$0xff]
  %v1242 = vld [vmem:[%s1237 + $0x20] sm:$0xff]
  %v1243 = vld [vmem:[%s1237 + $0x28] sm:$0xff]
  %v1245 = vsel %vm1127, %v1229, 0
  %v1248 = vsel %vm1127, %v1232, 0
  %v1251 = vsel %vm1127, %v1235, 0
  %1253 = vmatpush.msra.mxu0 0.0
  %1254 = vmatpush.msra.mxu0 0.0
  %1255 = vmatpush.msra.mxu0 0.0
  %1256 = vmatpush.msra.mxu0 0.0
  %1257 = vmatpush.msra.mxu0 0.0
  %1258 = vmatpush.msra.mxu0 0.0
  %1259 = vmatpush.msra.mxu0 0.0
  %1260 = vmatpush.msra.mxu0 0.0
  %1261 = vmatpush.msra.mxu0 0.0
  %1262 = vmatpush.msra.mxu0 0.0
  %1263 = vmatpush.msra.mxu0 %v1243
  %1264 = vmatpush.msra.mxu0 %v1242
  %1265 = vmatpush.msra.mxu0 %v1241
  %1266 = vmatpush.msra.mxu0 %v1240
  %1267 = vmatpush.msra.mxu0 %v1239
  %1268 = vmatpush.msra.mxu0 %v1238
  %1269 = vmatmul.f32.gmra.mxu0 %v1245
  %v1270 = vpop.f32.mrf.mxu0
  %v1271 = vadd.f32 0.0, %v1270
  %1272 = vmatmul.f32.gmra.mxu0 %v1248
  %v1273 = vpop.f32.mrf.mxu0
  %v1274 = vadd.f32 0.0, %v1273
  %1275 = vmatmul.f32.gmra.mxu0 %v1251
  %v1276 = vpop.f32.mrf.mxu0
  %v1277 = vadd.f32 0.0, %v1276
  %1278 = vdwg.mxu0
  %v1279 = vadd.f32 %v1190, %v1271
  %v1280 = vadd.f32 %v1193, %v1274
  %v1281 = vadd.f32 %v1196, %v1277
  %s1282 = scalar_lea.vmem %s9, 72
  %v1283 = vld [vmem:[%s1282] sm:$0xff]
  %v1284 = vld [vmem:[%s1282 + $0x8] sm:$0xff]
  %v1285 = vld [vmem:[%s1282 + $0x10] sm:$0xf]
  %v1287 = vsel %vm1036, %v1283, 0
  %v1290 = vsel %vm1036, %v1284, 0
  %v1293 = vsel %vm1036, %v1285, 0
  %1295 = vmatpush.msra.mxu0 0.0
  %1296 = vmatpush.msra.mxu0 0.0
  %1297 = vmatpush.msra.mxu0 0.0
  %1298 = vmatpush.msra.mxu0 0.0
  %1299 = vmatpush.msra.mxu0 0.0
  %1300 = vmatpush.msra.mxu0 0.0
  %1301 = vmatpush.msra.mxu0 0.0
  %1302 = vmatpush.msra.mxu0 0.0
  %1303 = vmatpush.msra.mxu0 0.0
  %1304 = vmatpush.msra.mxu0 0.0
  %1305 = vmatpush.msra.mxu0 0.0
  %1306 = vmatpush.msra.mxu0 0.0
  %1307 = vmatpush.msra.mxu0 0.0
  %1308 = vmatpush.msra.mxu0 %v1047
  %1309 = vmatpush.msra.mxu0 %v1031
  %1310 = vmatpush.msra.mxu0 %v1030
  %1311 = vmatmul.f32.gmra.mxu0 %v1287
  %v1312 = vpop.f32.mrf.mxu0
  %v1313 = vadd.f32 0.0, %v1312
  %1314 = vmatmul.f32.gmra.mxu0 %v1290
  %v1315 = vpop.f32.mrf.mxu0
  %v1316 = vadd.f32 0.0, %v1315
  %1317 = vmatmul.f32.gmra.mxu0 %v1293
  %v1318 = vpop.f32.mrf.mxu0
  %v1319 = vadd.f32 0.0, %v1318
  %1320 = vdwg.mxu0
  %s1321 = scalar_lea.vmem %s10, 144
  %v1322 = vld [vmem:[%s1321] sm:$0xff]
  %v1323 = vld [vmem:[%s1321 + $0x8] sm:$0xff]
  %v1324 = vld [vmem:[%s1321 + $0x10] sm:$0xff]
  %v1325 = vld [vmem:[%s1321 + $0x18] sm:$0xff]
  %v1326 = vld [vmem:[%s1321 + $0x20] sm:$0xff]
  %v1327 = vld [vmem:[%s1321 + $0x28] sm:$0xff]
  %v1329 = vsel %vm1127, %v1313, 0
  %v1332 = vsel %vm1127, %v1316, 0
  %v1335 = vsel %vm1127, %v1319, 0
  %1337 = vmatpush.msra.mxu0 0.0
  %1338 = vmatpush.msra.mxu0 0.0
  %1339 = vmatpush.msra.mxu0 0.0
  %1340 = vmatpush.msra.mxu0 0.0
  %1341 = vmatpush.msra.mxu0 0.0
  %1342 = vmatpush.msra.mxu0 0.0
  %1343 = vmatpush.msra.mxu0 0.0
  %1344 = vmatpush.msra.mxu0 0.0
  %1345 = vmatpush.msra.mxu0 0.0
  %1346 = vmatpush.msra.mxu0 0.0
  %1347 = vmatpush.msra.mxu0 %v1327
  %1348 = vmatpush.msra.mxu0 %v1326
  %1349 = vmatpush.msra.mxu0 %v1325
  %1350 = vmatpush.msra.mxu0 %v1324
  %1351 = vmatpush.msra.mxu0 %v1323
  %1352 = vmatpush.msra.mxu0 %v1322
  %1353 = vmatmul.f32.gmra.mxu0 %v1329
  %v1354 = vpop.f32.mrf.mxu0
  %v1355 = vadd.f32 0.0, %v1354
  %1356 = vmatmul.f32.gmra.mxu0 %v1332
  %v1357 = vpop.f32.mrf.mxu0
  %v1358 = vadd.f32 0.0, %v1357
  %1359 = vmatmul.f32.gmra.mxu0 %v1335
  %v1360 = vpop.f32.mrf.mxu0
  %v1361 = vadd.f32 0.0, %v1360
  %1362 = vdwg.mxu0
  %v1363 = vadd.f32 %v1279, %v1355
  %v1364 = vadd.f32 %v1280, %v1358
  %v1365 = vadd.f32 %v1281, %v1361
  %s1366 = scalar_lea.vmem %s9, 96
  %v1367 = vld [vmem:[%s1366] sm:$0xff]
  %v1368 = vld [vmem:[%s1366 + $0x8] sm:$0xff]
  %v1369 = vld [vmem:[%s1366 + $0x10] sm:$0xf]
  %v1371 = vsel %vm1036, %v1367, 0
  %v1374 = vsel %vm1036, %v1368, 0
  %v1377 = vsel %vm1036, %v1369, 0
  %1379 = vmatpush.msra.mxu0 0.0
  %1380 = vmatpush.msra.mxu0 0.0
  %1381 = vmatpush.msra.mxu0 0.0
  %1382 = vmatpush.msra.mxu0 0.0
  %1383 = vmatpush.msra.mxu0 0.0
  %1384 = vmatpush.msra.mxu0 0.0
  %1385 = vmatpush.msra.mxu0 0.0
  %1386 = vmatpush.msra.mxu0 0.0
  %1387 = vmatpush.msra.mxu0 0.0
  %1388 = vmatpush.msra.mxu0 0.0
  %1389 = vmatpush.msra.mxu0 0.0
  %1390 = vmatpush.msra.mxu0 0.0
  %1391 = vmatpush.msra.mxu0 0.0
  %1392 = vmatpush.msra.mxu0 %v1047
  %1393 = vmatpush.msra.mxu0 %v1031
  %1394 = vmatpush.msra.mxu0 %v1030
  %1395 = vmatmul.f32.gmra.mxu0 %v1371
  %v1396 = vpop.f32.mrf.mxu0
  %v1397 = vadd.f32 0.0, %v1396
  %1398 = vmatmul.f32.gmra.mxu0 %v1374
  %v1399 = vpop.f32.mrf.mxu0
  %v1400 = vadd.f32 0.0, %v1399
  %1401 = vmatmul.f32.gmra.mxu0 %v1377
  %v1402 = vpop.f32.mrf.mxu0
  %v1403 = vadd.f32 0.0, %v1402
  %1404 = vdwg.mxu0
  %s1405 = scalar_lea.vmem %s10, 192
  %v1406 = vld [vmem:[%s1405] sm:$0xff]
  %v1407 = vld [vmem:[%s1405 + $0x8] sm:$0xff]
  %v1408 = vld [vmem:[%s1405 + $0x10] sm:$0xff]
  %v1409 = vld [vmem:[%s1405 + $0x18] sm:$0xff]
  %v1410 = vld [vmem:[%s1405 + $0x20] sm:$0xff]
  %v1411 = vld [vmem:[%s1405 + $0x28] sm:$0xff]
  %v1413 = vsel %vm1127, %v1397, 0
  %v1416 = vsel %vm1127, %v1400, 0
  %v1419 = vsel %vm1127, %v1403, 0
  %1421 = vmatpush.msra.mxu0 0.0
  %1422 = vmatpush.msra.mxu0 0.0
  %1423 = vmatpush.msra.mxu0 0.0
  %1424 = vmatpush.msra.mxu0 0.0
  %1425 = vmatpush.msra.mxu0 0.0
  %1426 = vmatpush.msra.mxu0 0.0
  %1427 = vmatpush.msra.mxu0 0.0
  %1428 = vmatpush.msra.mxu0 0.0
  %1429 = vmatpush.msra.mxu0 0.0
  %1430 = vmatpush.msra.mxu0 0.0
  %1431 = vmatpush.msra.mxu0 %v1411
  %1432 = vmatpush.msra.mxu0 %v1410
  %1433 = vmatpush.msra.mxu0 %v1409
  %1434 = vmatpush.msra.mxu0 %v1408
  %1435 = vmatpush.msra.mxu0 %v1407
  %1436 = vmatpush.msra.mxu0 %v1406
  %1437 = vmatmul.f32.gmra.mxu0 %v1413
  %v1438 = vpop.f32.mrf.mxu0
  %v1439 = vadd.f32 0.0, %v1438
  %1440 = vmatmul.f32.gmra.mxu0 %v1416
  %v1441 = vpop.f32.mrf.mxu0
  %v1442 = vadd.f32 0.0, %v1441
  %1443 = vmatmul.f32.gmra.mxu0 %v1419
  %v1444 = vpop.f32.mrf.mxu0
  %v1445 = vadd.f32 0.0, %v1444
  %1446 = vdwg.mxu0
  %v1447 = vadd.f32 %v1363, %v1439
  %v1448 = vadd.f32 %v1364, %v1442
  %v1449 = vadd.f32 %v1365, %v1445
  %v1450 = vld [vmem:[%s11] sm:$0xff]
  %v1451 = vld [vmem:[%s11 + $0x8] sm:$0xff]
  %v1452 = vld [vmem:[%s11 + $0x10] sm:$0xff]
  %v1453 = vld [vmem:[%s11 + $0x18] sm:$0xff]
  %v1454 = vld [vmem:[%s11 + $0x20] sm:$0xff]
  %v1455 = vld [vmem:[%s11 + $0x28] sm:$0xff]
  %v1456 = vld [vmem:[%s11 + $0x30] sm:$0xff]
  %v1457 = vld [vmem:[%s11 + $0x38] sm:$0xff]
  %v1458 = vld [vmem:[%s11 + $0x40] sm:$0xff]
  %v1459 = vld [vmem:[%s11 + $0x48] sm:$0xff]
  %v1460 = vld [vmem:[%s11 + $0x50] sm:$0xff]
  %v1461 = vld [vmem:[%s11 + $0x58] sm:$0xff]
  %v1463 = vsel %vm642, %v1447, 0
  %v1466 = vsel %vm642, %v1448, 0
  %v1469 = vsel %vm642, %v1449, 0
  %1471 = vmatpush.msra.mxu0 0.0
  %1472 = vmatpush.msra.mxu0 0.0
  %1473 = vmatpush.msra.mxu0 0.0
  %1474 = vmatpush.msra.mxu0 0.0
  %1475 = vmatpush.msra.mxu0 %v1461
  %1476 = vmatpush.msra.mxu0 %v1460
  %1477 = vmatpush.msra.mxu0 %v1459
  %1478 = vmatpush.msra.mxu0 %v1458
  %1479 = vmatpush.msra.mxu0 %v1457
  %1480 = vmatpush.msra.mxu0 %v1456
  %1481 = vmatpush.msra.mxu0 %v1455
  %1482 = vmatpush.msra.mxu0 %v1454
  %1483 = vmatpush.msra.mxu0 %v1453
  %1484 = vmatpush.msra.mxu0 %v1452
  %1485 = vmatpush.msra.mxu0 %v1451
  %1486 = vmatpush.msra.mxu0 %v1450
  %1487 = vmatmul.f32.gmra.mxu0 %v1463
  %v1488 = vpop.f32.mrf.mxu0
  %v1489 = vadd.f32 0.0, %v1488
  %1490 = vmatmul.f32.gmra.mxu0 %v1466
  %v1491 = vpop.f32.mrf.mxu0
  %v1492 = vadd.f32 0.0, %v1491
  %1493 = vmatmul.f32.gmra.mxu0 %v1469
  %v1494 = vpop.f32.mrf.mxu0
  %v1495 = vadd.f32 0.0, %v1494
  %1496 = vdwg.mxu0
  %vm1497 = vcmask 130048
  %v1498 = vsel %vm1497, %v1489, 0.0
  %v1499 = vsel %vm1497, %v1492, 0.0
  %v1500 = vadd.f32 %v1498, %v1499
  %vm1501 = vcmask 125952
  %v1502 = vsel %vm1501, %v1495, 0.0
  %v1503 = vadd.f32 %v1500, %v1502
  %v1504 = vrot.slane %v1503, 4
  %v1505 = vadd.f32 %v1503, %v1504
  %v1506 = vrot.slane %v1505, 2
  %v1507 = vadd.f32 %v1505, %v1506
  %v1508 = vrot.slane %v1507, 1
  %v1509 = vadd.f32 %v1507, %v1508
  %v1510 = vmul.f32 %v1447, %v1447
  %v1511 = vmul.f32 %v1448, %v1448
  %v1512 = vmul.f32 %v1449, %v1449
  %v1514 = vsel %vm642, %v1510, 0
  %v1517 = vsel %vm642, %v1511, 0
  %v1520 = vsel %vm642, %v1512, 0
  %1522 = vmatpush.msra.mxu0 0.0
  %1523 = vmatpush.msra.mxu0 0.0
  %1524 = vmatpush.msra.mxu0 0.0
  %1525 = vmatpush.msra.mxu0 0.0
  %1526 = vmatpush.msra.mxu0 %v1461
  %1527 = vmatpush.msra.mxu0 %v1460
  %1528 = vmatpush.msra.mxu0 %v1459
  %1529 = vmatpush.msra.mxu0 %v1458
  %1530 = vmatpush.msra.mxu0 %v1457
  %1531 = vmatpush.msra.mxu0 %v1456
  %1532 = vmatpush.msra.mxu0 %v1455
  %1533 = vmatpush.msra.mxu0 %v1454
  %1534 = vmatpush.msra.mxu0 %v1453
  %1535 = vmatpush.msra.mxu0 %v1452
  %1536 = vmatpush.msra.mxu0 %v1451
  %1537 = vmatpush.msra.mxu0 %v1450
  %1538 = vmatmul.f32.gmra.mxu0 %v1514
  %v1539 = vpop.f32.mrf.mxu0
  %v1540 = vadd.f32 0.0, %v1539
  %1541 = vmatmul.f32.gmra.mxu0 %v1517
  %v1542 = vpop.f32.mrf.mxu0
  %v1543 = vadd.f32 0.0, %v1542
  %1544 = vmatmul.f32.gmra.mxu0 %v1520
  %v1545 = vpop.f32.mrf.mxu0
  %v1546 = vadd.f32 0.0, %v1545
  %1547 = vdwg.mxu0
  %v1548 = vsel %vm1497, %v1540, 0.0
  %v1549 = vsel %vm1497, %v1543, 0.0
  %v1550 = vadd.f32 %v1548, %v1549
  %v1551 = vsel %vm1501, %v1546, 0.0
  %v1552 = vadd.f32 %v1550, %v1551
  %v1553 = vrot.slane %v1552, 4
  %v1554 = vadd.f32 %v1552, %v1553
  %v1555 = vrot.slane %v1554, 2
  %v1556 = vadd.f32 %v1554, %v1555
  %v1557 = vrot.slane %v1556, 1
  %v1558 = vadd.f32 %v1556, %v1557
  %v1559 = vrcp.pop 120.0
  %v1560 = vmul.f32 120.0, %v1559
  %v1561 = vsub.f32 1.0, %v1560
  %v1562 = vmul.f32 %v1559, %v1561
  %v1563 = vadd.f32 %v1559, %v1562
  %vm1564 = vweird.f32 %v1559
  %v1565 = vsel %vm1564, %v1559, %v1563
  %v1566 = vmul.f32 %v1509, %v1565
  %v1567 = vmul.f32 %v1558, %v1565
  %v1568 = vmul.f32 %v1566, %v1566
  %v1569 = vsub.f32 %v1567, %v1568
  %v1570 = vld [vmem:[%s13] sm:$0x1]
  %v1571 = vadd.f32 %v1569, 1e-05
  %v1572 = vrsqrt.pop %v1571
  %v1573 = vmul.f32 %v1572, %v1571
  %v1574 = vmul.f32 %v1573, %v1572
  %v1575 = vmul.f32 0.5, %v1574
  %v1576 = vsub.f32 1.5, %v1575
  %v1577 = vmul.f32 %v1572, %v1576
  %vm1578 = vweird.f32 %v1571
  %vm1579 = vweird.f32 %v1572
  %vm1580 = vmor %vm1578, %vm1579
  %v1581 = vsel %vm1580, %v1572, %v1577
  %v1582 = vmul.f32 %v1570, %v1581
  %v1583 = vld [vmem:[%s14] sm:$0x1]
  %v1584 = vmul.f32 %v1566, %v1582
  %v1585 = vsub.f32 %v1583, %v1584
  %v1586 = vld [vmem:[%s12] sm:$0xff]
  %v1587 = vld [vmem:[%s12 + $0x8] sm:$0xff]
  %v1589 = vsel %vm1497, %v1582, 0
  %1591 = vmatpush.msra.mxu0 0.0
  %1592 = vmatpush.msra.mxu0 0.0
  %1593 = vmatpush.msra.mxu0 0.0
  %1594 = vmatpush.msra.mxu0 0.0
  %1595 = vmatpush.msra.mxu0 0.0
  %1596 = vmatpush.msra.mxu0 0.0
  %1597 = vmatpush.msra.mxu0 0.0
  %1598 = vmatpush.msra.mxu0 0.0
  %1599 = vmatpush.msra.mxu0 0.0
  %1600 = vmatpush.msra.mxu0 0.0
  %1601 = vmatpush.msra.mxu0 0.0
  %1602 = vmatpush.msra.mxu0 0.0
  %1603 = vmatpush.msra.mxu0 0.0
  %1604 = vmatpush.msra.mxu0 0.0
  %1605 = vmatpush.msra.mxu0 %v1587
  %1606 = vmatpush.msra.mxu0 %v1586
  %1607 = vmatmul.f32.gmra.mxu0 %v1589
  %v1608 = vpop.f32.mrf.mxu0
  %v1609 = vadd.f32 0.0, %v1608
  %1610 = vdwg.mxu0
  %v1612 = vsel %vm1497, %v1585, 0
  %1614 = vmatpush.msra.mxu0 0.0
  %1615 = vmatpush.msra.mxu0 0.0
  %1616 = vmatpush.msra.mxu0 0.0
  %1617 = vmatpush.msra.mxu0 0.0
  %1618 = vmatpush.msra.mxu0 0.0
  %1619 = vmatpush.msra.mxu0 0.0
  %1620 = vmatpush.msra.mxu0 0.0
  %1621 = vmatpush.msra.mxu0 0.0
  %1622 = vmatpush.msra.mxu0 0.0
  %1623 = vmatpush.msra.mxu0 0.0
  %1624 = vmatpush.msra.mxu0 0.0
  %1625 = vmatpush.msra.mxu0 0.0
  %1626 = vmatpush.msra.mxu0 0.0
  %1627 = vmatpush.msra.mxu0 0.0
  %1628 = vmatpush.msra.mxu0 %v1587
  %1629 = vmatpush.msra.mxu0 %v1586
  %1630 = vmatmul.f32.gmra.mxu0 %v1612
  %v1631 = vpop.f32.mrf.mxu0
  %v1632 = vadd.f32 0.0, %v1631
  %1633 = vdwg.mxu0
  %v1634 = vperm.slane %v1609, 0
  %v1635 = vmul.f32 %v1447, %v1634
  %v1636 = vmul.f32 %v1448, %v1634
  %v1637 = vmul.f32 %v1449, %v1634
  %v1638 = vperm.slane %v1632, 0
  %v1639 = vadd.f32 %v1635, %v1638
  %v1640 = vadd.f32 %v1636, %v1638
  %v1641 = vadd.f32 %v1637, %v1638
  %v1642 = vmax.f32 %v1639, 0.0
  %v1643 = vmax.f32 %v1640, 0.0
  %v1644 = vmax.f32 %v1641, 0.0
  %v1645 = vld [vmem:[%s15] sm:$0xff]
  %v1646 = vld [vmem:[%s15 + $0x8] sm:$0x3]
  %v1648 = vsel %vm1036, %v1645, 0
  %v1651 = vsel %vm1036, %v1646, 0
  %v1654 = vsel %vm211, %v1644, 0
  %1656 = vmatpush.msra.mxu0 0.0
  %1657 = vmatpush.msra.mxu0 0.0
  %1658 = vmatpush.msra.mxu0 0.0
  %1659 = vmatpush.msra.mxu0 0.0
  %1660 = vmatpush.msra.mxu0 0.0
  %1661 = vmatpush.msra.mxu0 0.0
  %1662 = vmatpush.msra.mxu0 0.0
  %1663 = vmatpush.msra.mxu0 0.0
  %1664 = vmatpush.msra.mxu0 0.0
  %1665 = vmatpush.msra.mxu0 0.0
  %1666 = vmatpush.msra.mxu0 0.0
  %1667 = vmatpush.msra.mxu0 0.0
  %1668 = vmatpush.msra.mxu0 0.0
  %1669 = vmatpush.msra.mxu0 %v1654
  %1670 = vmatpush.msra.mxu0 %v1643
  %1671 = vmatpush.msra.mxu0 %v1642
  %1672 = vmatmul.f32.gmra.mxu0 %v1648
  %v1673 = vpop.f32.mrf.mxu0
  %v1674 = vadd.f32 0.0, %v1673
  %1675 = vmatmul.f32.gmra.mxu0 %v1651
  %v1676 = vpop.f32.mrf.mxu0
  %v1677 = vadd.f32 0.0, %v1676
  %1678 = vdwg.mxu0
  %s1679 = scalar_lea.vmem %s15, 16
  %v1680 = vld [vmem:[%s1679] sm:$0xff]
  %v1681 = vld [vmem:[%s1679 + $0x8] sm:$0x3]
  %v1683 = vsel %vm1036, %v1680, 0
  %v1686 = vsel %vm1036, %v1681, 0
  %1688 = vmatpush.msra.mxu0 0.0
  %1689 = vmatpush.msra.mxu0 0.0
  %1690 = vmatpush.msra.mxu0 0.0
  %1691 = vmatpush.msra.mxu0 0.0
  %1692 = vmatpush.msra.mxu0 0.0
  %1693 = vmatpush.msra.mxu0 0.0
  %1694 = vmatpush.msra.mxu0 0.0
  %1695 = vmatpush.msra.mxu0 0.0
  %1696 = vmatpush.msra.mxu0 0.0
  %1697 = vmatpush.msra.mxu0 0.0
  %1698 = vmatpush.msra.mxu0 0.0
  %1699 = vmatpush.msra.mxu0 0.0
  %1700 = vmatpush.msra.mxu0 0.0
  %1701 = vmatpush.msra.mxu0 %v1654
  %1702 = vmatpush.msra.mxu0 %v1643
  %1703 = vmatpush.msra.mxu0 %v1642
  %1704 = vmatmul.f32.gmra.mxu0 %v1683
  %v1705 = vpop.f32.mrf.mxu0
  %v1706 = vadd.f32 0.0, %v1705
  %1707 = vmatmul.f32.gmra.mxu0 %v1686
  %v1708 = vpop.f32.mrf.mxu0
  %v1709 = vadd.f32 0.0, %v1708
  %1710 = vdwg.mxu0
  %v1711 = vmax.f32 %v1674, %v1706
  %v1712 = vmax.f32 %v1677, %v1709
  %v1713 = vld [vmem:[%s16] sm:$0xff]
  %v1714 = vld [vmem:[%s16 + $0x8] sm:$0xff]
  %v1715 = vld [vmem:[%s16 + $0x10] sm:$0xff]
  %v1716 = vld [vmem:[%s16 + $0x18] sm:$0xff]
  %v1717 = vld [vmem:[%s16 + $0x20] sm:$0xff]
  %v1718 = vld [vmem:[%s16 + $0x28] sm:$0xff]
  %v1719 = vld [vmem:[%s16 + $0x30] sm:$0xff]
  %v1720 = vld [vmem:[%s16 + $0x38] sm:$0xff]
  %v1721 = vld [vmem:[%s16 + $0x40] sm:$0xff]
  %v1722 = vld [vmem:[%s16 + $0x48] sm:$0xff]
  %v1723 = vld [vmem:[%s16 + $0x50] sm:$0xff]
  %v1724 = vld [vmem:[%s16 + $0x58] sm:$0xff]
  %v1726 = vsel %vm642, %v1711, 0
  %v1729 = vsel %vm642, %v1712, 0
  %1731 = vmatpush.msra.mxu0 0.0
  %1732 = vmatpush.msra.mxu0 0.0
  %1733 = vmatpush.msra.mxu0 0.0
  %1734 = vmatpush.msra.mxu0 0.0
  %1735 = vmatpush.msra.mxu0 %v1724
  %1736 = vmatpush.msra.mxu0 %v1723
  %1737 = vmatpush.msra.mxu0 %v1722
  %1738 = vmatpush.msra.mxu0 %v1721
  %1739 = vmatpush.msra.mxu0 %v1720
  %1740 = vmatpush.msra.mxu0 %v1719
  %1741 = vmatpush.msra.mxu0 %v1718
  %1742 = vmatpush.msra.mxu0 %v1717
  %1743 = vmatpush.msra.mxu0 %v1716
  %1744 = vmatpush.msra.mxu0 %v1715
  %1745 = vmatpush.msra.mxu0 %v1714
  %1746 = vmatpush.msra.mxu0 %v1713
  %1747 = vmatmul.f32.gmra.mxu0 %v1726
  %v1748 = vpop.f32.mrf.mxu0
  %v1749 = vadd.f32 0.0, %v1748
  %1750 = vmatmul.f32.gmra.mxu0 %v1729
  %v1751 = vpop.f32.mrf.mxu0
  %v1752 = vadd.f32 0.0, %v1751
  %1753 = vdwg.mxu0
  %s1754 = scalar_lea.vmem %s16, 96
  %v1755 = vld [vmem:[%s1754] sm:$0xff]
  %v1756 = vld [vmem:[%s1754 + $0x8] sm:$0xff]
  %v1757 = vld [vmem:[%s1754 + $0x10] sm:$0xff]
  %v1758 = vld [vmem:[%s1754 + $0x18] sm:$0xff]
  %v1759 = vld [vmem:[%s1754 + $0x20] sm:$0xff]
  %v1760 = vld [vmem:[%s1754 + $0x28] sm:$0xff]
  %v1761 = vld [vmem:[%s1754 + $0x30] sm:$0xff]
  %v1762 = vld [vmem:[%s1754 + $0x38] sm:$0xff]
  %v1763 = vld [vmem:[%s1754 + $0x40] sm:$0xff]
  %v1764 = vld [vmem:[%s1754 + $0x48] sm:$0xff]
  %v1765 = vld [vmem:[%s1754 + $0x50] sm:$0xff]
  %v1766 = vld [vmem:[%s1754 + $0x58] sm:$0xff]
  %1767 = vmatpush.msra.mxu0 0.0
  %1768 = vmatpush.msra.mxu0 0.0
  %1769 = vmatpush.msra.mxu0 0.0
  %1770 = vmatpush.msra.mxu0 0.0
  %1771 = vmatpush.msra.mxu0 %v1766
  %1772 = vmatpush.msra.mxu0 %v1765
  %1773 = vmatpush.msra.mxu0 %v1764
  %1774 = vmatpush.msra.mxu0 %v1763
  %1775 = vmatpush.msra.mxu0 %v1762
  %1776 = vmatpush.msra.mxu0 %v1761
  %1777 = vmatpush.msra.mxu0 %v1760
  %1778 = vmatpush.msra.mxu0 %v1759
  %1779 = vmatpush.msra.mxu0 %v1758
  %1780 = vmatpush.msra.mxu0 %v1757
  %1781 = vmatpush.msra.mxu0 %v1756
  %1782 = vmatpush.msra.mxu0 %v1755
  %1783 = vmatmul.f32.gmra.mxu0 %v1726
  %v1784 = vpop.f32.mrf.mxu0
  %v1785 = vadd.f32 0.0, %v1784
  %1786 = vmatmul.f32.gmra.mxu0 %v1729
  %v1787 = vpop.f32.mrf.mxu0
  %v1788 = vadd.f32 0.0, %v1787
  %1789 = vdwg.mxu0
  %v1790 = vmax.f32 %v1749, %v1785
  %v1791 = vmax.f32 %v1752, %v1788
  %v1792 = vld [vmem:[%s19] sm:$0x1]
  %v1793 = vld [vmem:[%s17] sm:$0x3]
  %vm1794 = vcmask 80896
  %v1796 = vsel %vm1794, %v1793, 0
  %vm1798 = vcmask 1041408
  %v1800 = vsel %vm1798, %v1791, 0
  %1802 = vmatpush.msra.mxu0 0.0
  %1803 = vmatpush.msra.mxu0 0.0
  %1804 = vmatpush.msra.mxu0 0.0
  %1805 = vmatpush.msra.mxu0 0.0
  %1806 = vmatpush.msra.mxu0 0.0
  %1807 = vmatpush.msra.mxu0 0.0
  %1808 = vmatpush.msra.mxu0 0.0
  %1809 = vmatpush.msra.mxu0 0.0
  %1810 = vmatpush.msra.mxu0 0.0
  %1811 = vmatpush.msra.mxu0 0.0
  %1812 = vmatpush.msra.mxu0 0.0
  %1813 = vmatpush.msra.mxu0 0.0
  %1814 = vmatpush.msra.mxu0 0.0
  %1815 = vmatpush.msra.mxu0 0.0
  %1816 = vmatpush.msra.mxu0 %v1800
  %1817 = vmatpush.msra.mxu0 %v1790
  %1818 = vmatmul.f32.gmra.mxu0 %v1796
  %v1819 = vpop.f32.mrf.mxu0
  %v1820 = vadd.f32 0.0, %v1819
  %1821 = vdwg.mxu0
  %v1822 = vld [vmem:[%s18] sm:$0xff]
  %v1823 = vld [vmem:[%s18 + $0x8] sm:$0xff]
  %v1824 = vld [vmem:[%s18 + $0x10] sm:$0xff]
  %v1825 = vld [vmem:[%s18 + $0x18] sm:$0xff]
  %v1826 = vld [vmem:[%s18 + $0x20] sm:$0xff]
  %v1827 = vld [vmem:[%s18 + $0x28] sm:$0xff]
  %v1829 = vsel %vm1127, %v1820, 0
  %1831 = vmatpush.msra.mxu0 0.0
  %1832 = vmatpush.msra.mxu0 0.0
  %1833 = vmatpush.msra.mxu0 0.0
  %1834 = vmatpush.msra.mxu0 0.0
  %1835 = vmatpush.msra.mxu0 0.0
  %1836 = vmatpush.msra.mxu0 0.0
  %1837 = vmatpush.msra.mxu0 0.0
  %1838 = vmatpush.msra.mxu0 0.0
  %1839 = vmatpush.msra.mxu0 0.0
  %1840 = vmatpush.msra.mxu0 0.0
  %1841 = vmatpush.msra.mxu0 %v1827
  %1842 = vmatpush.msra.mxu0 %v1826
  %1843 = vmatpush.msra.mxu0 %v1825
  %1844 = vmatpush.msra.mxu0 %v1824
  %1845 = vmatpush.msra.mxu0 %v1823
  %1846 = vmatpush.msra.mxu0 %v1822
  %1847 = vmatmul.f32.gmra.mxu0 %v1829
  %v1848 = vpop.f32.mrf.mxu0
  %v1849 = vadd.f32 0.0, %v1848
  %1850 = vdwg.mxu0
  %v1852 = vperm.slane %v1792, 0
  %v1854 = vadd.f32 %v1852, %v1849
  %s1855 = scalar_lea.vmem %s17, 2
  %v1856 = vld [vmem:[%s1855] sm:$0x3]
  %v1858 = vsel %vm1794, %v1856, 0
  %1860 = vmatpush.msra.mxu0 0.0
  %1861 = vmatpush.msra.mxu0 0.0
  %1862 = vmatpush.msra.mxu0 0.0
  %1863 = vmatpush.msra.mxu0 0.0
  %1864 = vmatpush.msra.mxu0 0.0
  %1865 = vmatpush.msra.mxu0 0.0
  %1866 = vmatpush.msra.mxu0 0.0
  %1867 = vmatpush.msra.mxu0 0.0
  %1868 = vmatpush.msra.mxu0 0.0
  %1869 = vmatpush.msra.mxu0 0.0
  %1870 = vmatpush.msra.mxu0 0.0
  %1871 = vmatpush.msra.mxu0 0.0
  %1872 = vmatpush.msra.mxu0 0.0
  %1873 = vmatpush.msra.mxu0 0.0
  %1874 = vmatpush.msra.mxu0 %v1800
  %1875 = vmatpush.msra.mxu0 %v1790
  %1876 = vmatmul.f32.gmra.mxu0 %v1858
  %v1877 = vpop.f32.mrf.mxu0
  %v1878 = vadd.f32 0.0, %v1877
  %1879 = vdwg.mxu0
  %s1880 = scalar_lea.vmem %s18, 48
  %v1881 = vld [vmem:[%s1880] sm:$0xff]
  %v1882 = vld [vmem:[%s1880 + $0x8] sm:$0xff]
  %v1883 = vld [vmem:[%s1880 + $0x10] sm:$0xff]
  %v1884 = vld [vmem:[%s1880 + $0x18] sm:$0xff]
  %v1885 = vld [vmem:[%s1880 + $0x20] sm:$0xff]
  %v1886 = vld [vmem:[%s1880 + $0x28] sm:$0xff]
  %v1888 = vsel %vm1127, %v1878, 0
  %1890 = vmatpush.msra.mxu0 0.0
  %1891 = vmatpush.msra.mxu0 0.0
  %1892 = vmatpush.msra.mxu0 0.0
  %1893 = vmatpush.msra.mxu0 0.0
  %1894 = vmatpush.msra.mxu0 0.0
  %1895 = vmatpush.msra.mxu0 0.0
  %1896 = vmatpush.msra.mxu0 0.0
  %1897 = vmatpush.msra.mxu0 0.0
  %1898 = vmatpush.msra.mxu0 0.0
  %1899 = vmatpush.msra.mxu0 0.0
  %1900 = vmatpush.msra.mxu0 %v1886
  %1901 = vmatpush.msra.mxu0 %v1885
  %1902 = vmatpush.msra.mxu0 %v1884
  %1903 = vmatpush.msra.mxu0 %v1883
  %1904 = vmatpush.msra.mxu0 %v1882
  %1905 = vmatpush.msra.mxu0 %v1881
  %1906 = vmatmul.f32.gmra.mxu0 %v1888
  %v1907 = vpop.f32.mrf.mxu0
  %v1908 = vadd.f32 0.0, %v1907
  %1909 = vdwg.mxu0
  %v1910 = vadd.f32 %v1854, %v1908
  %s1911 = scalar_lea.vmem %s17, 4
  %v1912 = vld [vmem:[%s1911] sm:$0x3]
  %v1914 = vsel %vm1794, %v1912, 0
  %1916 = vmatpush.msra.mxu0 0.0
  %1917 = vmatpush.msra.mxu0 0.0
  %1918 = vmatpush.msra.mxu0 0.0
  %1919 = vmatpush.msra.mxu0 0.0
  %1920 = vmatpush.msra.mxu0 0.0
  %1921 = vmatpush.msra.mxu0 0.0
  %1922 = vmatpush.msra.mxu0 0.0
  %1923 = vmatpush.msra.mxu0 0.0
  %1924 = vmatpush.msra.mxu0 0.0
  %1925 = vmatpush.msra.mxu0 0.0
  %1926 = vmatpush.msra.mxu0 0.0
  %1927 = vmatpush.msra.mxu0 0.0
  %1928 = vmatpush.msra.mxu0 0.0
  %1929 = vmatpush.msra.mxu0 0.0
  %1930 = vmatpush.msra.mxu0 %v1800
  %1931 = vmatpush.msra.mxu0 %v1790
  %1932 = vmatmul.f32.gmra.mxu0 %v1914
  %v1933 = vpop.f32.mrf.mxu0
  %v1934 = vadd.f32 0.0, %v1933
  %1935 = vdwg.mxu0
  %s1936 = scalar_lea.vmem %s18, 96
  %v1937 = vld [vmem:[%s1936] sm:$0xff]
  %v1938 = vld [vmem:[%s1936 + $0x8] sm:$0xff]
  %v1939 = vld [vmem:[%s1936 + $0x10] sm:$0xff]
  %v1940 = vld [vmem:[%s1936 + $0x18] sm:$0xff]
  %v1941 = vld [vmem:[%s1936 + $0x20] sm:$0xff]
  %v1942 = vld [vmem:[%s1936 + $0x28] sm:$0xff]
  %v1944 = vsel %vm1127, %v1934, 0
  %1946 = vmatpush.msra.mxu0 0.0
  %1947 = vmatpush.msra.mxu0 0.0
  %1948 = vmatpush.msra.mxu0 0.0
  %1949 = vmatpush.msra.mxu0 0.0
  %1950 = vmatpush.msra.mxu0 0.0
  %1951 = vmatpush.msra.mxu0 0.0
  %1952 = vmatpush.msra.mxu0 0.0
  %1953 = vmatpush.msra.mxu0 0.0
  %1954 = vmatpush.msra.mxu0 0.0
  %1955 = vmatpush.msra.mxu0 0.0
  %1956 = vmatpush.msra.mxu0 %v1942
  %1957 = vmatpush.msra.mxu0 %v1941
  %1958 = vmatpush.msra.mxu0 %v1940
  %1959 = vmatpush.msra.mxu0 %v1939
  %1960 = vmatpush.msra.mxu0 %v1938
  %1961 = vmatpush.msra.mxu0 %v1937
  %1962 = vmatmul.f32.gmra.mxu0 %v1944
  %v1963 = vpop.f32.mrf.mxu0
  %v1964 = vadd.f32 0.0, %v1963
  %1965 = vdwg.mxu0
  %v1966 = vadd.f32 %v1910, %v1964
  %s1967 = scalar_lea.vmem %s17, 6
  %v1968 = vld [vmem:[%s1967] sm:$0x3]
  %v1970 = vsel %vm1794, %v1968, 0
  %1972 = vmatpush.msra.mxu0 0.0
  %1973 = vmatpush.msra.mxu0 0.0
  %1974 = vmatpush.msra.mxu0 0.0
  %1975 = vmatpush.msra.mxu0 0.0
  %1976 = vmatpush.msra.mxu0 0.0
  %1977 = vmatpush.msra.mxu0 0.0
  %1978 = vmatpush.msra.mxu0 0.0
  %1979 = vmatpush.msra.mxu0 0.0
  %1980 = vmatpush.msra.mxu0 0.0
  %1981 = vmatpush.msra.mxu0 0.0
  %1982 = vmatpush.msra.mxu0 0.0
  %1983 = vmatpush.msra.mxu0 0.0
  %1984 = vmatpush.msra.mxu0 0.0
  %1985 = vmatpush.msra.mxu0 0.0
  %1986 = vmatpush.msra.mxu0 %v1800
  %1987 = vmatpush.msra.mxu0 %v1790
  %1988 = vmatmul.f32.gmra.mxu0 %v1970
  %v1989 = vpop.f32.mrf.mxu0
  %v1990 = vadd.f32 0.0, %v1989
  %1991 = vdwg.mxu0
  %s1992 = scalar_lea.vmem %s18, 144
  %v1993 = vld [vmem:[%s1992] sm:$0xff]
  %v1994 = vld [vmem:[%s1992 + $0x8] sm:$0xff]
  %v1995 = vld [vmem:[%s1992 + $0x10] sm:$0xff]
  %v1996 = vld [vmem:[%s1992 + $0x18] sm:$0xff]
  %v1997 = vld [vmem:[%s1992 + $0x20] sm:$0xff]
  %v1998 = vld [vmem:[%s1992 + $0x28] sm:$0xff]
  %v2000 = vsel %vm1127, %v1990, 0
  %2002 = vmatpush.msra.mxu0 0.0
  %2003 = vmatpush.msra.mxu0 0.0
  %2004 = vmatpush.msra.mxu0 0.0
  %2005 = vmatpush.msra.mxu0 0.0
  %2006 = vmatpush.msra.mxu0 0.0
  %2007 = vmatpush.msra.mxu0 0.0
  %2008 = vmatpush.msra.mxu0 0.0
  %2009 = vmatpush.msra.mxu0 0.0
  %2010 = vmatpush.msra.mxu0 0.0
  %2011 = vmatpush.msra.mxu0 0.0
  %2012 = vmatpush.msra.mxu0 %v1998
  %2013 = vmatpush.msra.mxu0 %v1997
  %2014 = vmatpush.msra.mxu0 %v1996
  %2015 = vmatpush.msra.mxu0 %v1995
  %2016 = vmatpush.msra.mxu0 %v1994
  %2017 = vmatpush.msra.mxu0 %v1993
  %2018 = vmatmul.f32.gmra.mxu0 %v2000
  %v2019 = vpop.f32.mrf.mxu0
  %v2020 = vadd.f32 0.0, %v2019
  %2021 = vdwg.mxu0
  %v2022 = vadd.f32 %v1966, %v2020
  %s2023 = scalar_lea.vmem %s17, 8
  %v2024 = vld [vmem:[%s2023] sm:$0x3]
  %v2026 = vsel %vm1794, %v2024, 0
  %2028 = vmatpush.msra.mxu0 0.0
  %2029 = vmatpush.msra.mxu0 0.0
  %2030 = vmatpush.msra.mxu0 0.0
  %2031 = vmatpush.msra.mxu0 0.0
  %2032 = vmatpush.msra.mxu0 0.0
  %2033 = vmatpush.msra.mxu0 0.0
  %2034 = vmatpush.msra.mxu0 0.0
  %2035 = vmatpush.msra.mxu0 0.0
  %2036 = vmatpush.msra.mxu0 0.0
  %2037 = vmatpush.msra.mxu0 0.0
  %2038 = vmatpush.msra.mxu0 0.0
  %2039 = vmatpush.msra.mxu0 0.0
  %2040 = vmatpush.msra.mxu0 0.0
  %2041 = vmatpush.msra.mxu0 0.0
  %2042 = vmatpush.msra.mxu0 %v1800
  %2043 = vmatpush.msra.mxu0 %v1790
  %2044 = vmatmul.f32.gmra.mxu0 %v2026
  %v2045 = vpop.f32.mrf.mxu0
  %v2046 = vadd.f32 0.0, %v2045
  %2047 = vdwg.mxu0
  %s2048 = scalar_lea.vmem %s18, 192
  %v2049 = vld [vmem:[%s2048] sm:$0xff]
  %v2050 = vld [vmem:[%s2048 + $0x8] sm:$0xff]
  %v2051 = vld [vmem:[%s2048 + $0x10] sm:$0xff]
  %v2052 = vld [vmem:[%s2048 + $0x18] sm:$0xff]
  %v2053 = vld [vmem:[%s2048 + $0x20] sm:$0xff]
  %v2054 = vld [vmem:[%s2048 + $0x28] sm:$0xff]
  %v2056 = vsel %vm1127, %v2046, 0
  %2058 = vmatpush.msra.mxu0 0.0
  %2059 = vmatpush.msra.mxu0 0.0
  %2060 = vmatpush.msra.mxu0 0.0
  %2061 = vmatpush.msra.mxu0 0.0
  %2062 = vmatpush.msra.mxu0 0.0
  %2063 = vmatpush.msra.mxu0 0.0
  %2064 = vmatpush.msra.mxu0 0.0
  %2065 = vmatpush.msra.mxu0 0.0
  %2066 = vmatpush.msra.mxu0 0.0
  %2067 = vmatpush.msra.mxu0 0.0
  %2068 = vmatpush.msra.mxu0 %v2054
  %2069 = vmatpush.msra.mxu0 %v2053
  %2070 = vmatpush.msra.mxu0 %v2052
  %2071 = vmatpush.msra.mxu0 %v2051
  %2072 = vmatpush.msra.mxu0 %v2050
  %2073 = vmatpush.msra.mxu0 %v2049
  %2074 = vmatmul.f32.gmra.mxu0 %v2056
  %v2075 = vpop.f32.mrf.mxu0
  %v2076 = vadd.f32 0.0, %v2075
  %2077 = vdwg.mxu0
  %v2078 = vadd.f32 %v2022, %v2076
  %v2079 = vmax.f32 %v2078, 0.0
  %v2080 = vld [vmem:[%s20] sm:$0xff]
  %v2081 = vld [vmem:[%s20 + $0x8] sm:$0xff]
  %v2082 = vld [vmem:[%s20 + $0x10] sm:$0xff]
  %v2083 = vld [vmem:[%s20 + $0x18] sm:$0xff]
  %v2084 = vld [vmem:[%s20 + $0x20] sm:$0xff]
  %v2085 = vld [vmem:[%s20 + $0x28] sm:$0xff]
  %v2086 = vld [vmem:[%s20 + $0x30] sm:$0xff]
  %v2087 = vld [vmem:[%s20 + $0x38] sm:$0xff]
  %v2088 = vld [vmem:[%s20 + $0x40] sm:$0xff]
  %v2089 = vld [vmem:[%s20 + $0x48] sm:$0xff]
  %v2090 = vld [vmem:[%s20 + $0x50] sm:$0xff]
  %v2091 = vld [vmem:[%s20 + $0x58] sm:$0xff]
  %v2092 = vld [vmem:[%s20 + $0x60] sm:$0xff]
  %v2093 = vld [vmem:[%s20 + $0x68] sm:$0xff]
  %v2094 = vld [vmem:[%s20 + $0x70] sm:$0xff]
  %v2095 = vld [vmem:[%s20 + $0x78] sm:$0xff]
  %v2096 = vld [vmem:[%s21] sm:$0x1]
  %v2098 = vperm.slane %v2096, 0
  %2100 = vmatpush.msra.mxu0 %v2095
  %2101 = vmatpush.msra.mxu0 %v2094
  %2102 = vmatpush.msra.mxu0 %v2093
  %2103 = vmatpush.msra.mxu0 %v2092
  %2104 = vmatpush.msra.mxu0 %v2091
  %2105 = vmatpush.msra.mxu0 %v2090
  %2106 = vmatpush.msra.mxu0 %v2089
  %2107 = vmatpush.msra.mxu0 %v2088
  %2108 = vmatpush.msra.mxu0 %v2087
  %2109 = vmatpush.msra.mxu0 %v2086
  %2110 = vmatpush.msra.mxu0 %v2085
  %2111 = vmatpush.msra.mxu0 %v2084
  %2112 = vmatpush.msra.mxu0 %v2083
  %2113 = vmatpush.msra.mxu0 %v2082
  %2114 = vmatpush.msra.mxu0 %v2081
  %2115 = vmatpush.msra.mxu0 %v2080
  %2116 = vmatmul.f32.gmra.mxu0 %v2079
  %v2117 = vpop.f32.mrf.mxu0
  %v2118 = vadd.f32 %v2098, %v2117
  %2119 = vdwg.mxu0
  %v2120 = vmax.f32 %v2118, 0.0
  %v2121 = vld [vmem:[%s22] sm:$0xff]
  %v2122 = vld [vmem:[%s22 + $0x8] sm:$0xff]
  %v2123 = vld [vmem:[%s22 + $0x10] sm:$0xff]
  %v2124 = vld [vmem:[%s22 + $0x18] sm:$0xff]
  %v2125 = vld [vmem:[%s22 + $0x20] sm:$0xff]
  %v2126 = vld [vmem:[%s22 + $0x28] sm:$0xff]
  %v2127 = vld [vmem:[%s22 + $0x30] sm:$0xff]
  %v2128 = vld [vmem:[%s22 + $0x38] sm:$0xff]
  %v2129 = vld [vmem:[#allocation2] sm:$0x1]
  %v2131 = vperm.slane %v2129, 0
  %vm2133 = vcmask 523264
  %v2135 = vsel %vm2133, %v2120, 0
  %2137 = vmatpush.msra.mxu0 0.0
  %2138 = vmatpush.msra.mxu0 0.0
  %2139 = vmatpush.msra.mxu0 0.0
  %2140 = vmatpush.msra.mxu0 0.0
  %2141 = vmatpush.msra.mxu0 0.0
  %2142 = vmatpush.msra.mxu0 0.0
  %2143 = vmatpush.msra.mxu0 0.0
  %2144 = vmatpush.msra.mxu0 0.0
  %2145 = vmatpush.msra.mxu0 %v2128
  %2146 = vmatpush.msra.mxu0 %v2127
  %2147 = vmatpush.msra.mxu0 %v2126
  %2148 = vmatpush.msra.mxu0 %v2125
  %2149 = vmatpush.msra.mxu0 %v2124
  %2150 = vmatpush.msra.mxu0 %v2123
  %2151 = vmatpush.msra.mxu0 %v2122
  %2152 = vmatpush.msra.mxu0 %v2121
  %2153 = vmatmul.f32.gmra.mxu0 %v2135
  %v2154 = vpop.f32.mrf.mxu0
  %v2155 = vadd.f32 %v2131, %v2154
  %2156 = vdwg.mxu0
  %vm2157 = vcmask 1024
  %2158 = vst.msk [vmem:[%s24] sm:$0x3] %vm2157, %v2155
  // Predicated region
  $region98: #{convnet_forward.1} parent=0 // pred_check
    _
  $region99: #{convnet_forward.1} parent=0 // pred_check_branch
    %2160 = sbr.rel (0) target = $region101
  $region100: #{convnet_forward.1} parent=0 // pred_region
    _
  $region101: #{convnet_forward.1} parent=0 // pred_fallthru
    _
  // Predicated region
  $region102: #{convnet_forward.1} parent=0 // pred_check
    _
  $region103: #{convnet_forward.1} parent=0 // pred_check_branch
    %2162 = sbr.rel (0) target = $region105
  $region104: #{convnet_forward.1} parent=0 // pred_region
    _
  $region105: #{convnet_forward.1} parent=0 // pred_fallthru
    _

</llo_original>
